<compile_context>
chip_gen: v5e
topology: v5e:2x2
jax: 0.10.0
libtpu: 0.0.40
codegen_flags: <defaults>
</compile_context>

<pallas_src>
import functools

import jax
import jax.numpy as jnp
from jax.experimental import pallas as pl
from jax.experimental.pallas import tpu as pltpu


# -----------------------------------------------------------------------------
# Static model configuration (small synthetic config, consistent with the module).
# -----------------------------------------------------------------------------
CFG = dict(
    base_channels=8,
    channel_factors=(4, 2, 1),      # backbone channels: 32 -> 16 -> 8
    kernel_size=4,
    condition_size=2,
    latent_size=16,
    condition_embedding_size=16,
    initial_size=4,
    target_size=16,
)
CHANS = [CFG["base_channels"] * f for f in CFG["channel_factors"]]
TOTAL = CFG["latent_size"] + CFG["condition_embedding_size"]
# (cin, cout, K, stride, padding) for every ConvTranspose2d: backbone + postprocess.
CONV_LAYERS = (
    [(TOTAL, CHANS[0], CFG["initial_size"], 1, 0)]                      # 1x1 -> 4x4
    + [(ci, co, CFG["kernel_size"], 2, (CFG["kernel_size"] - 2) // 2)   # 2x upsample
       for ci, co in zip(CHANS[:-1], CHANS[1:])]
    + [(CHANS[-1], 3, CFG["kernel_size"], 1, 0)]                        # postprocess
)


def _round_up(x, m):
    return (x + m - 1) // m * m


# -----------------------------------------------------------------------------
# Pallas kernel 1: fused GEMM with optional prologue (bias+ReLU of previous layer)
# and optional epilogue bias.  bf16 operands on the MXU, f32 accumulation.
# -----------------------------------------------------------------------------
def _gemm_kernel(x_ref, bi_ref, w_ref, bo_ref, o_ref, *, pre_relu, out_bias):
    x = x_ref[...]                                       # f32 activations
    if pre_relu:                                         # previous layer's bias + ReLU
        x = jnp.maximum(x + bi_ref[...], 0.0)            # (applied after its col2im)
    acc = jnp.dot(x.astype(jnp.bfloat16), w_ref[...],    # bf16 MXU, f32 accumulate
                  preferred_element_type=jnp.float32)
    if out_bias:
        acc = acc + bo_ref[...]
    o_ref[...] = acc


def fused_gemm(x, w_bf16, *, in_bias=None, out_bias=None, block_m=128):
    """y = (ReLU(x + in_bias) if in_bias else x) @ w + out_bias.

    x: (M, K) f32, w_bf16: (K, N) bf16.  Tiled over rows only (K and N are small and
    lane-dense here; a K-reduction axis would be added before scaling to real sizes).
    """
    M, K = x.shape
    Kw, N = w_bf16.shape
    assert K == Kw
    bm = min(_round_up(M, 8), block_m)                   # right-size tile (no 128-pad)
    m_pad = _round_up(M, bm)
    if m_pad != M:
        x = jnp.pad(x, ((0, m_pad - M), (0, 0)))
    bi = (jnp.zeros((K,), jnp.float32) if in_bias is None else in_bias).reshape(1, K)
    bo = (jnp.zeros((N,), jnp.float32) if out_bias is None else out_bias).reshape(1, N)
    out = pl.pallas_call(
        functools.partial(_gemm_kernel,
                          pre_relu=in_bias is not None,
                          out_bias=out_bias is not None),
        out_shape=jax.ShapeDtypeStruct((m_pad, N), jnp.float32),
        grid=(m_pad // bm,),
        in_specs=[
            pl.BlockSpec((bm, K), lambda i: (i, 0)),     # activations
            pl.BlockSpec((1, K), lambda i: (0, 0)),      # prologue bias (prev layer)
            pl.BlockSpec((K, N), lambda i: (0, 0)),      # weight, resident in VMEM
            pl.BlockSpec((1, N), lambda i: (0, 0)),      # epilogue bias
        ],
        out_specs=pl.BlockSpec((bm, N), lambda i: (i, 0)),
        compiler_params=pltpu.CompilerParams(dimension_semantics=("parallel",)),
    )(x, bi, w_bf16, bo)
    return out[:M] if m_pad != M else out


# -----------------------------------------------------------------------------
# Pallas kernel 2: final bias + (tanh(x)+1)/2 on a lane-dense (B, T*T*3) slab.
# -----------------------------------------------------------------------------
def _bias_tanh_kernel(x_ref, b_ref, o_ref):
    o_ref[...] = (jnp.tanh(x_ref[...] + b_ref[...]) + 1.0) * 0.5


def final_bias_tanh(x, bias_row):
    M, N = x.shape
    return pl.pallas_call(
        _bias_tanh_kernel,
        out_shape=jax.ShapeDtypeStruct((M, N), jnp.float32),
        grid=(1,),
        in_specs=[pl.BlockSpec((M, N), lambda i: (0, 0)),
                  pl.BlockSpec((1, N), lambda i: (0, 0))],
        out_specs=pl.BlockSpec((M, N), lambda i: (0, 0)),
    )(x, bias_row)


# -----------------------------------------------------------------------------
# col2im / overlap-add (XLA glue under jit): place each input position's GEMM
# contribution at output (stride*iy + ky - pad, stride*ix + kx - pad) and sum overlaps.
# This is exactly PyTorch ConvTranspose2d semantics, without zero-dilation.
# -----------------------------------------------------------------------------
def col2im_overlap_add(cols, *, stride, padding):
    B, H, W, K, _, C = cols.shape
    Hf = (H - 1) * stride + K
    Wf = (W - 1) * stride + K
    out = jnp.zeros((B, Hf, Wf, C), cols.dtype)
    for ky in range(K):
        for kx in range(K):
            out = out.at[:, ky:ky + (H - 1) * stride + 1:stride,
                            kx:kx + (W - 1) * stride + 1:stride, :].add(
                cols[:, :, :, ky, kx, :])
    if padding:
        out = out[:, padding:Hf - padding, padding:Wf - padding, :]
    return out


# -----------------------------------------------------------------------------
# Parameters: synthetic weights in PyTorch ConvTranspose2d layout, packed once into
# GEMM-ready bf16 matrices (perf review: convert at init, not per call).
# -----------------------------------------------------------------------------
def init_params(key):
    keys = iter(jax.random.split(key, 2 + 2 * len(CONV_LAYERS)))

    def w(shape, scale=0.05):
        return (scale * jax.random.normal(next(keys), shape)).astype(jnp.float32)

    return {
        # nn.Linear(condition_size, condition_embedding_size) stored as (in, out)
        "emb_w": w((CFG["condition_size"], CFG["condition_embedding_size"])),
        "emb_b": w((CFG["condition_embedding_size"],)),
        # ConvTranspose2d weights in torch layout (Cin, Cout, K, K) + bias (Cout,)
        "convs": [(w((cin, cout, K, K)), w((cout,)))
                  for (cin, cout, K, _, _) in CONV_LAYERS],
    }


def pack_params(raw):
    conv_w, conv_b = [], []
    for w_pt, b in raw["convs"]:
        cin, cout, K, _ = w_pt.shape
        # (Cin, Cout, K, K) -> (Cin, K*K*Cout); (ky, kx, co) ordering matches the
        # (B, H, W, K, K, Cout) reshape of the GEMM output used by col2im.
        w_mat = w_pt.transpose(0, 2, 3, 1).reshape(cin, K * K * cout)
        conv_w.append(w_mat.astype(jnp.bfloat16))
        conv_b.append(b.astype(jnp.float32))
    return {
        "emb_w": raw["emb_w"].astype(jnp.bfloat16),
        "emb_b": raw["emb_b"].astype(jnp.float32),
        "conv_w": conv_w,
        "conv_b": conv_b,
    }


# -----------------------------------------------------------------------------
# Forward pass (single jit): mirrors HistoGenerator.forward((latent, [one_hot])).
# -----------------------------------------------------------------------------
@jax.jit
def histo_generator_forward(packed, latent, condition_one_hot):
    T = CFG["target_size"]
    B = latent.shape[0]

    # out = cat(latent, embed_condition(condition))
    emb = fused_gemm(condition_one_hot, packed["emb_w"], out_bias=packed["emb_b"])
    x = jnp.concatenate([latent, emb], axis=1)           # (B, TOTAL) = (B,1,1,TOTAL) flat

    H = W = 1
    prev_bias = None                                     # bias+ReLU fused into next GEMM
    y = None
    for (cin, cout, K, stride, pad), w_mat, b in zip(
            CONV_LAYERS, packed["conv_w"], packed["conv_b"]):
        cols = fused_gemm(x, w_mat, in_bias=prev_bias)   # (B*H*W, K*K*cout), lane-dense
        cols = cols.reshape(B, H, W, K, K, cout)
        y = col2im_overlap_add(cols, stride=stride, padding=pad)   # pre-bias NHWC output
        H, W = y.shape[1], y.shape[2]
        x = y.reshape(B * H * W, cout)
        prev_bias = b

    # y = postprocess conv output (pre-bias), (B, 19, 19, 3).  Center-crop to target,
    # then the fused bias + (tanh+1)/2 epilogue (pointwise, commutes with the crop).
    start = (H - T) // 2
    y = y[:, start:start + T, start:start + T, :]
    flat = y.reshape(B, T * T * 3)
    b_tiled = jnp.tile(prev_bias, T * T).reshape(1, T * T * 3)
    img = final_bias_tanh(flat, b_tiled).reshape(B, T, T, 3)
    img = jnp.transpose(img, (0, 3, 1, 2))               # NCHW, like the PyTorch module
    return img, [condition_one_hot]


if __name__ == "__main__":
    key = jax.random.PRNGKey(0)
    k_params, k_noise, k_cond = jax.random.split(key, 3)
    B = 2
    packed = pack_params(init_params(k_params))

    # HistoGenerator.sample(batch_size) equivalent
    latent = jax.random.normal(k_noise, (B, CFG["latent_size"]), jnp.float32)
    cond_idx = jax.random.randint(k_cond, (B,), 0, CFG["condition_size"])
    one_hot = jax.nn.one_hot(cond_idx, CFG["condition_size"], dtype=jnp.float32)

    img, (cond_out,) = histo_generator_forward(packed, latent, one_hot)
    img = jax.block_until_ready(img)

    assert img.shape == (B, 3, CFG["target_size"], CFG["target_size"]), img.shape
    assert img.dtype == jnp.float32
    assert bool(jnp.all(jnp.isfinite(img)))
    assert bool(jnp.all((img >= 0.0) & (img <= 1.0)))    # (tanh+1)/2 range
    print("KERNEL_OK")
</pallas_src>

<mosaic_0001>
module attributes {stable_mosaic.version = 11 : i64} {
  func.func @_gemm_kernel(%arg0: i32, %arg1: memref<8x2xf32, #tpu.memory_space<vmem>>, %arg2: memref<1x2xf32, #tpu.memory_space<vmem>>, %arg3: memref<2x16xbf16, #tpu.memory_space<vmem>>, %arg4: memref<1x16xf32, #tpu.memory_space<vmem>>, %arg5: memref<8x16xf32, #tpu.memory_space<vmem>>) attributes {dimension_semantics = [#tpu.dimension_semantics<parallel>], iteration_bounds = array<i64: 1>, scalar_prefetch = 0 : i64, scratch_operands = 0 : i64, tpu.core_type = #tpu.core_type<tc>, window_params = [{transform_indices = @transform_0, window_bounds = array<i64: 8, 2>}, {pipeline_mode = #tpu.pipeline_mode<synchronous>, transform_indices = @transform_1, window_bounds = array<i64: 1, 2>}, {pipeline_mode = #tpu.pipeline_mode<synchronous>, transform_indices = @transform_2, window_bounds = array<i64: 2, 16>}, {pipeline_mode = #tpu.pipeline_mode<synchronous>, transform_indices = @transform_3, window_bounds = array<i64: 1, 16>}, {transform_indices = @transform_4, window_bounds = array<i64: 8, 16>}]} {
    %c0 = arith.constant 0 : index
    %c0_0 = arith.constant 0 : index
    %0 = vector.load %arg1[%c0, %c0_0] : memref<8x2xf32, #tpu.memory_space<vmem>>, vector<8x2xf32>
    %1 = arith.truncf %0 : vector<8x2xf32> to vector<8x2xbf16>
    %c0_1 = arith.constant 0 : index
    %c0_2 = arith.constant 0 : index
    %2 = vector.load %arg3[%c0_1, %c0_2] : memref<2x16xbf16, #tpu.memory_space<vmem>>, vector<2x16xbf16>
    %cst = arith.constant dense<0.000000e+00> : vector<8x16xf32>
    %3 = tpu.matmul %1, %2, %cst {dimension_numbers = #tpu.dot_dimension_numbers<[1], [0], [0], [1], [0, 0, 1, 1], [], []>} : vector<8x2xbf16>, vector<2x16xbf16>, vector<8x16xf32> -> vector<8x16xf32>
    %c0_3 = arith.constant 0 : index
    %c0_4 = arith.constant 0 : index
    %4 = vector.load %arg4[%c0_3, %c0_4] : memref<1x16xf32, #tpu.memory_space<vmem>>, vector<1x16xf32>
    %5 = vector.broadcast %4 : vector<1x16xf32> to vector<8x16xf32>
    %6 = arith.addf %3, %5 : vector<8x16xf32>
    %c0_5 = arith.constant 0 : index
    %c0_6 = arith.constant 0 : index
    %7 = vector.load %arg5[%c0_5, %c0_6] : memref<8x16xf32, #tpu.memory_space<vmem>>, vector<8x16xf32>
    tpu.vector_store %arg5[%c0_5, %c0_6], %6 {strides = array<i32>} : memref<8x16xf32, #tpu.memory_space<vmem>>, vector<8x16xf32>,
    return
  }
  func.func @transform_0(%arg0: i32) -> (i32, i32) {
    %c0_i32 = arith.constant 0 : i32
    %c0_i32_0 = arith.constant 0 : i32
    return %arg0, %c0_i32 : i32, i32
  }
  func.func @transform_1(%arg0: i32) -> (i32, i32) {
    %c0_i32 = arith.constant 0 : i32
    %c0_i32_0 = arith.constant 0 : i32
    %c0_i32_1 = arith.constant 0 : i32
    return %c0_i32, %c0_i32_0 : i32, i32
  }
  func.func @transform_2(%arg0: i32) -> (i32, i32) {
    %c0_i32 = arith.constant 0 : i32
    %c0_i32_0 = arith.constant 0 : i32
    %c0_i32_1 = arith.constant 0 : i32
    return %c0_i32, %c0_i32_0 : i32, i32
  }
  func.func @transform_3(%arg0: i32) -> (i32, i32) {
    %c0_i32 = arith.constant 0 : i32
    %c0_i32_0 = arith.constant 0 : i32
    %c0_i32_1 = arith.constant 0 : i32
    return %c0_i32, %c0_i32_0 : i32, i32
  }
  func.func @transform_4(%arg0: i32) -> (i32, i32) {
    %c0_i32 = arith.constant 0 : i32
    %c0_i32_0 = arith.constant 0 : i32
    return %arg0, %c0_i32 : i32, i32
  }
}

module attributes {stable_mosaic.version = 11 : i64} {
  func.func @_gemm_kernel(%arg0: i32, %arg1: memref<8x32xf32, #tpu.memory_space<vmem>>, %arg2: memref<1x32xf32, #tpu.memory_space<vmem>>, %arg3: memref<32x512xbf16, #tpu.memory_space<vmem>>, %arg4: memref<1x512xf32, #tpu.memory_space<vmem>>, %arg5: memref<8x512xf32, #tpu.memory_space<vmem>>) attributes {dimension_semantics = [#tpu.dimension_semantics<parallel>], iteration_bounds = array<i64: 1>, scalar_prefetch = 0 : i64, scratch_operands = 0 : i64, tpu.core_type = #tpu.core_type<tc>, window_params = [{transform_indices = @transform_0, window_bounds = array<i64: 8, 32>}, {pipeline_mode = #tpu.pipeline_mode<synchronous>, transform_indices = @transform_1, window_bounds = array<i64: 1, 32>}, {pipeline_mode = #tpu.pipeline_mode<synchronous>, transform_indices = @transform_2, window_bounds = array<i64: 32, 512>}, {pipeline_mode = #tpu.pipeline_mode<synchronous>, transform_indices = @transform_3, window_bounds = array<i64: 1, 512>}, {transform_indices = @transform_4, window_bounds = array<i64: 8, 512>}]} {
    %c0 = arith.constant 0 : index
    %c0_0 = arith.constant 0 : index
    %0 = vector.load %arg1[%c0, %c0_0] : memref<8x32xf32, #tpu.memory_space<vmem>>, vector<8x32xf32>
    %1 = arith.truncf %0 : vector<8x32xf32> to vector<8x32xbf16>
    %c0_1 = arith.constant 0 : index
    %c0_2 = arith.constant 0 : index
    %2 = vector.load %arg3[%c0_1, %c0_2] : memref<32x512xbf16, #tpu.memory_space<vmem>>, vector<32x512xbf16>
    %cst = arith.constant dense<0.000000e+00> : vector<8x512xf32>
    %3 = tpu.matmul %1, %2, %cst {dimension_numbers = #tpu.dot_dimension_numbers<[1], [0], [0], [1], [0, 0, 1, 1], [], []>} : vector<8x32xbf16>, vector<32x512xbf16>, vector<8x512xf32> -> vector<8x512xf32>
    %c0_3 = arith.constant 0 : index
    %c0_4 = arith.constant 0 : index
    %4 = vector.load %arg5[%c0_3, %c0_4] : memref<8x512xf32, #tpu.memory_space<vmem>>, vector<8x512xf32>
    tpu.vector_store %arg5[%c0_3, %c0_4], %3 {strides = array<i32>} : memref<8x512xf32, #tpu.memory_space<vmem>>, vector<8x512xf32>,
    return
  }
  func.func @transform_0(%arg0: i32) -> (i32, i32) {
    %c0_i32 = arith.constant 0 : i32
    %c0_i32_0 = arith.constant 0 : i32
    return %arg0, %c0_i32 : i32, i32
  }
  func.func @transform_1(%arg0: i32) -> (i32, i32) {
    %c0_i32 = arith.constant 0 : i32
    %c0_i32_0 = arith.constant 0 : i32
    %c0_i32_1 = arith.constant 0 : i32
    return %c0_i32, %c0_i32_0 : i32, i32
  }
  func.func @transform_2(%arg0: i32) -> (i32, i32) {
    %c0_i32 = arith.constant 0 : i32
    %c0_i32_0 = arith.constant 0 : i32
    %c0_i32_1 = arith.constant 0 : i32
    return %c0_i32, %c0_i32_0 : i32, i32
  }
  func.func @transform_3(%arg0: i32) -> (i32, i32) {
    %c0_i32 = arith.constant 0 : i32
    %c0_i32_0 = arith.constant 0 : i32
    %c0_i32_1 = arith.constant 0 : i32
    return %c0_i32, %c0_i32_0 : i32, i32
  }
  func.func @transform_4(%arg0: i32) -> (i32, i32) {
    %c0_i32 = arith.constant 0 : i32
    %c0_i32_0 = arith.constant 0 : i32
    return %arg0, %c0_i32 : i32, i32
  }
}

module attributes {stable_mosaic.version = 11 : i64} {
  func.func @_gemm_kernel(%arg0: i32, %arg1: memref<32x32xf32, #tpu.memory_space<vmem>>, %arg2: memref<1x32xf32, #tpu.memory_space<vmem>>, %arg3: memref<32x256xbf16, #tpu.memory_space<vmem>>, %arg4: memref<1x256xf32, #tpu.memory_space<vmem>>, %arg5: memref<32x256xf32, #tpu.memory_space<vmem>>) attributes {dimension_semantics = [#tpu.dimension_semantics<parallel>], iteration_bounds = array<i64: 1>, scalar_prefetch = 0 : i64, scratch_operands = 0 : i64, tpu.core_type = #tpu.core_type<tc>, window_params = [{transform_indices = @transform_0, window_bounds = array<i64: 32, 32>}, {pipeline_mode = #tpu.pipeline_mode<synchronous>, transform_indices = @transform_1, window_bounds = array<i64: 1, 32>}, {pipeline_mode = #tpu.pipeline_mode<synchronous>, transform_indices = @transform_2, window_bounds = array<i64: 32, 256>}, {pipeline_mode = #tpu.pipeline_mode<synchronous>, transform_indices = @transform_3, window_bounds = array<i64: 1, 256>}, {transform_indices = @transform_4, window_bounds = array<i64: 32, 256>}]} {
    %c0 = arith.constant 0 : index
    %c0_0 = arith.constant 0 : index
    %0 = vector.load %arg1[%c0, %c0_0] : memref<32x32xf32, #tpu.memory_space<vmem>>, vector<32x32xf32>
    %c0_1 = arith.constant 0 : index
    %c0_2 = arith.constant 0 : index
    %1 = vector.load %arg2[%c0_1, %c0_2] : memref<1x32xf32, #tpu.memory_space<vmem>>, vector<1x32xf32>
    %2 = vector.broadcast %1 : vector<1x32xf32> to vector<32x32xf32>
    %3 = arith.addf %0, %2 : vector<32x32xf32>
    %cst = arith.constant 0.000000e+00 : f32
    %4 = vector.broadcast %cst : f32 to vector<32x32xf32>
    %5 = arith.maximumf %3, %4 : vector<32x32xf32>
    %6 = arith.truncf %5 : vector<32x32xf32> to vector<32x32xbf16>
    %c0_3 = arith.constant 0 : index
    %c0_4 = arith.constant 0 : index
    %7 = vector.load %arg3[%c0_3, %c0_4] : memref<32x256xbf16, #tpu.memory_space<vmem>>, vector<32x256xbf16>
    %cst_5 = arith.constant dense<0.000000e+00> : vector<32x256xf32>
    %8 = tpu.matmul %6, %7, %cst_5 {dimension_numbers = #tpu.dot_dimension_numbers<[1], [0], [0], [1], [0, 0, 1, 1], [], []>} : vector<32x32xbf16>, vector<32x256xbf16>, vector<32x256xf32> -> vector<32x256xf32>
    %c0_6 = arith.constant 0 : index
    %c0_7 = arith.constant 0 : index
    %9 = vector.load %arg5[%c0_6, %c0_7] : memref<32x256xf32, #tpu.memory_space<vmem>>, vector<32x256xf32>
    tpu.vector_store %arg5[%c0_6, %c0_7], %8 {strides = array<i32>} : memref<32x256xf32, #tpu.memory_space<vmem>>, vector<32x256xf32>,
    return
  }
  func.func @transform_0(%arg0: i32) -> (i32, i32) {
    %c0_i32 = arith.constant 0 : i32
    %c0_i32_0 = arith.constant 0 : i32
    return %arg0, %c0_i32 : i32, i32
  }
  func.func @transform_1(%arg0: i32) -> (i32, i32) {
    %c0_i32 = arith.constant 0 : i32
    %c0_i32_0 = arith.constant 0 : i32
    %c0_i32_1 = arith.constant 0 : i32
    return %c0_i32, %c0_i32_0 : i32, i32
  }
  func.func @transform_2(%arg0: i32) -> (i32, i32) {
    %c0_i32 = arith.constant 0 : i32
    %c0_i32_0 = arith.constant 0 : i32
    %c0_i32_1 = arith.constant 0 : i32
    return %c0_i32, %c0_i32_0 : i32, i32
  }
  func.func @transform_3(%arg0: i32) -> (i32, i32) {
    %c0_i32 = arith.constant 0 : i32
    %c0_i32_0 = arith.constant 0 : i32
    %c0_i32_1 = arith.constant 0 : i32
    return %c0_i32, %c0_i32_0 : i32, i32
  }
  func.func @transform_4(%arg0: i32) -> (i32, i32) {
    %c0_i32 = arith.constant 0 : i32
    %c0_i32_0 = arith.constant 0 : i32
    return %arg0, %c0_i32 : i32, i32
  }
}

module attributes {stable_mosaic.version = 11 : i64} {
  func.func @_gemm_kernel(%arg0: i32, %arg1: memref<128x16xf32, #tpu.memory_space<vmem>>, %arg2: memref<1x16xf32, #tpu.memory_space<vmem>>, %arg3: memref<16x128xbf16, #tpu.memory_space<vmem>>, %arg4: memref<1x128xf32, #tpu.memory_space<vmem>>, %arg5: memref<128x128xf32, #tpu.memory_space<vmem>>) attributes {dimension_semantics = [#tpu.dimension_semantics<parallel>], iteration_bounds = array<i64: 1>, scalar_prefetch = 0 : i64, scratch_operands = 0 : i64, tpu.core_type = #tpu.core_type<tc>, window_params = [{transform_indices = @transform_0, window_bounds = array<i64: 128, 16>}, {pipeline_mode = #tpu.pipeline_mode<synchronous>, transform_indices = @transform_1, window_bounds = array<i64: 1, 16>}, {pipeline_mode = #tpu.pipeline_mode<synchronous>, transform_indices = @transform_2, window_bounds = array<i64: 16, 128>}, {pipeline_mode = #tpu.pipeline_mode<synchronous>, transform_indices = @transform_3, window_bounds = array<i64: 1, 128>}, {transform_indices = @transform_4, window_bounds = array<i64: 128, 128>}]} {
    %c0 = arith.constant 0 : index
    %c0_0 = arith.constant 0 : index
    %0 = vector.load %arg1[%c0, %c0_0] : memref<128x16xf32, #tpu.memory_space<vmem>>, vector<128x16xf32>
    %c0_1 = arith.constant 0 : index
    %c0_2 = arith.constant 0 : index
    %1 = vector.load %arg2[%c0_1, %c0_2] : memref<1x16xf32, #tpu.memory_space<vmem>>, vector<1x16xf32>
    %2 = vector.broadcast %1 : vector<1x16xf32> to vector<128x16xf32>
    %3 = arith.addf %0, %2 : vector<128x16xf32>
    %cst = arith.constant 0.000000e+00 : f32
    %4 = vector.broadcast %cst : f32 to vector<128x16xf32>
    %5 = arith.maximumf %3, %4 : vector<128x16xf32>
    %6 = arith.truncf %5 : vector<128x16xf32> to vector<128x16xbf16>
    %c0_3 = arith.constant 0 : index
    %c0_4 = arith.constant 0 : index
    %7 = vector.load %arg3[%c0_3, %c0_4] : memref<16x128xbf16, #tpu.memory_space<vmem>>, vector<16x128xbf16>
    %cst_5 = arith.constant dense<0.000000e+00> : vector<128x128xf32>
    %8 = tpu.matmul %6, %7, %cst_5 {dimension_numbers = #tpu.dot_dimension_numbers<[1], [0], [0], [1], [0, 0, 1, 1], [], []>} : vector<128x16xbf16>, vector<16x128xbf16>, vector<128x128xf32> -> vector<128x128xf32>
    %c0_6 = arith.constant 0 : index
    %c0_7 = arith.constant 0 : index
    %9 = vector.load %arg5[%c0_6, %c0_7] : memref<128x128xf32, #tpu.memory_space<vmem>>, vector<128x128xf32>
    tpu.vector_store %arg5[%c0_6, %c0_7], %8 {strides = array<i32>} : memref<128x128xf32, #tpu.memory_space<vmem>>, vector<128x128xf32>,
    return
  }
  func.func @transform_0(%arg0: i32) -> (i32, i32) {
    %c0_i32 = arith.constant 0 : i32
    %c0_i32_0 = arith.constant 0 : i32
    return %arg0, %c0_i32 : i32, i32
  }
  func.func @transform_1(%arg0: i32) -> (i32, i32) {
    %c0_i32 = arith.constant 0 : i32
    %c0_i32_0 = arith.constant 0 : i32
    %c0_i32_1 = arith.constant 0 : i32
    return %c0_i32, %c0_i32_0 : i32, i32
  }
  func.func @transform_2(%arg0: i32) -> (i32, i32) {
    %c0_i32 = arith.constant 0 : i32
    %c0_i32_0 = arith.constant 0 : i32
    %c0_i32_1 = arith.constant 0 : i32
    return %c0_i32, %c0_i32_0 : i32, i32
  }
  func.func @transform_3(%arg0: i32) -> (i32, i32) {
    %c0_i32 = arith.constant 0 : i32
    %c0_i32_0 = arith.constant 0 : i32
    %c0_i32_1 = arith.constant 0 : i32
    return %c0_i32, %c0_i32_0 : i32, i32
  }
  func.func @transform_4(%arg0: i32) -> (i32, i32) {
    %c0_i32 = arith.constant 0 : i32
    %c0_i32_0 = arith.constant 0 : i32
    return %arg0, %c0_i32 : i32, i32
  }
}

module attributes {stable_mosaic.version = 11 : i64} {
  func.func @_gemm_kernel(%arg0: i32, %arg1: memref<128x8xf32, #tpu.memory_space<vmem>>, %arg2: memref<1x8xf32, #tpu.memory_space<vmem>>, %arg3: memref<8x48xbf16, #tpu.memory_space<vmem>>, %arg4: memref<1x48xf32, #tpu.memory_space<vmem>>, %arg5: memref<128x48xf32, #tpu.memory_space<vmem>>) attributes {dimension_semantics = [#tpu.dimension_semantics<parallel>], iteration_bounds = array<i64: 4>, scalar_prefetch = 0 : i64, scratch_operands = 0 : i64, tpu.core_type = #tpu.core_type<tc>, window_params = [{transform_indices = @transform_0, window_bounds = array<i64: 128, 8>}, {pipeline_mode = #tpu.pipeline_mode<synchronous>, transform_indices = @transform_1, window_bounds = array<i64: 1, 8>}, {pipeline_mode = #tpu.pipeline_mode<synchronous>, transform_indices = @transform_2, window_bounds = array<i64: 8, 48>}, {pipeline_mode = #tpu.pipeline_mode<synchronous>, transform_indices = @transform_3, window_bounds = array<i64: 1, 48>}, {transform_indices = @transform_4, window_bounds = array<i64: 128, 48>}]} {
    %c0 = arith.constant 0 : index
    %c0_0 = arith.constant 0 : index
    %0 = vector.load %arg1[%c0, %c0_0] : memref<128x8xf32, #tpu.memory_space<vmem>>, vector<128x8xf32>
    %c0_1 = arith.constant 0 : index
    %c0_2 = arith.constant 0 : index
    %1 = vector.load %arg2[%c0_1, %c0_2] : memref<1x8xf32, #tpu.memory_space<vmem>>, vector<1x8xf32>
    %2 = vector.broadcast %1 : vector<1x8xf32> to vector<128x8xf32>
    %3 = arith.addf %0, %2 : vector<128x8xf32>
    %cst = arith.constant 0.000000e+00 : f32
    %4 = vector.broadcast %cst : f32 to vector<128x8xf32>
    %5 = arith.maximumf %3, %4 : vector<128x8xf32>
    %6 = arith.truncf %5 : vector<128x8xf32> to vector<128x8xbf16>
    %c0_3 = arith.constant 0 : index
    %c0_4 = arith.constant 0 : index
    %7 = vector.load %arg3[%c0_3, %c0_4] : memref<8x48xbf16, #tpu.memory_space<vmem>>, vector<8x48xbf16>
    %cst_5 = arith.constant dense<0.000000e+00> : vector<128x48xf32>
    %8 = tpu.matmul %6, %7, %cst_5 {dimension_numbers = #tpu.dot_dimension_numbers<[1], [0], [0], [1], [0, 0, 1, 1], [], []>} : vector<128x8xbf16>, vector<8x48xbf16>, vector<128x48xf32> -> vector<128x48xf32>
    %c0_6 = arith.constant 0 : index
    %c0_7 = arith.constant 0 : index
    %9 = vector.load %arg5[%c0_6, %c0_7] : memref<128x48xf32, #tpu.memory_space<vmem>>, vector<128x48xf32>
    tpu.vector_store %arg5[%c0_6, %c0_7], %8 {strides = array<i32>} : memref<128x48xf32, #tpu.memory_space<vmem>>, vector<128x48xf32>,
    return
  }
  func.func @transform_0(%arg0: i32) -> (i32, i32) {
    %c0_i32 = arith.constant 0 : i32
    %c0_i32_0 = arith.constant 0 : i32
    return %arg0, %c0_i32 : i32, i32
  }
  func.func @transform_1(%arg0: i32) -> (i32, i32) {
    %c0_i32 = arith.constant 0 : i32
    %c0_i32_0 = arith.constant 0 : i32
    %c0_i32_1 = arith.constant 0 : i32
    return %c0_i32, %c0_i32_0 : i32, i32
  }
  func.func @transform_2(%arg0: i32) -> (i32, i32) {
    %c0_i32 = arith.constant 0 : i32
    %c0_i32_0 = arith.constant 0 : i32
    %c0_i32_1 = arith.constant 0 : i32
    return %c0_i32, %c0_i32_0 : i32, i32
  }
  func.func @transform_3(%arg0: i32) -> (i32, i32) {
    %c0_i32 = arith.constant 0 : i32
    %c0_i32_0 = arith.constant 0 : i32
    %c0_i32_1 = arith.constant 0 : i32
    return %c0_i32, %c0_i32_0 : i32, i32
  }
  func.func @transform_4(%arg0: i32) -> (i32, i32) {
    %c0_i32 = arith.constant 0 : i32
    %c0_i32_0 = arith.constant 0 : i32
    return %arg0, %c0_i32 : i32, i32
  }
}

module attributes {stable_mosaic.version = 11 : i64} {
  func.func @_bias_tanh_kernel(%arg0: i32, %arg1: memref<2x768xf32, #tpu.memory_space<vmem>>, %arg2: memref<1x768xf32, #tpu.memory_space<vmem>>, %arg3: memref<2x768xf32, #tpu.memory_space<vmem>>) attributes {dimension_semantics = [#tpu.dimension_semantics<arbitrary>], iteration_bounds = array<i64: 1>, scalar_prefetch = 0 : i64, scratch_operands = 0 : i64, tpu.core_type = #tpu.core_type<tc>, window_params = [{pipeline_mode = #tpu.pipeline_mode<synchronous>, transform_indices = @transform_0, window_bounds = array<i64: 2, 768>}, {pipeline_mode = #tpu.pipeline_mode<synchronous>, transform_indices = @transform_1, window_bounds = array<i64: 1, 768>}, {pipeline_mode = #tpu.pipeline_mode<synchronous>, transform_indices = @transform_2, window_bounds = array<i64: 2, 768>}]} {
    %c0 = arith.constant 0 : index
    %c0_0 = arith.constant 0 : index
    %0 = vector.load %arg1[%c0, %c0_0] : memref<2x768xf32, #tpu.memory_space<vmem>>, vector<2x768xf32>
    %c0_1 = arith.constant 0 : index
    %c0_2 = arith.constant 0 : index
    %1 = vector.load %arg2[%c0_1, %c0_2] : memref<1x768xf32, #tpu.memory_space<vmem>>, vector<1x768xf32>
    %2 = vector.broadcast %1 : vector<1x768xf32> to vector<2x768xf32>
    %3 = arith.addf %0, %2 : vector<2x768xf32>
    %4 = math.tanh %3 : vector<2x768xf32>
    %cst = arith.constant 1.000000e+00 : f32
    %5 = vector.broadcast %cst : f32 to vector<2x768xf32>
    %6 = arith.addf %4, %5 : vector<2x768xf32>
    %cst_3 = arith.constant 5.000000e-01 : f32
    %7 = vector.broadcast %cst_3 : f32 to vector<2x768xf32>
    %8 = arith.mulf %6, %7 : vector<2x768xf32>
    %c0_4 = arith.constant 0 : index
    %c0_5 = arith.constant 0 : index
    %9 = vector.load %arg3[%c0_4, %c0_5] : memref<2x768xf32, #tpu.memory_space<vmem>>, vector<2x768xf32>
    tpu.vector_store %arg3[%c0_4, %c0_5], %8 {strides = array<i32>} : memref<2x768xf32, #tpu.memory_space<vmem>>, vector<2x768xf32>,
    return
  }
  func.func @transform_0(%arg0: i32) -> (i32, i32) {
    %c0_i32 = arith.constant 0 : i32
    %c0_i32_0 = arith.constant 0 : i32
    %c0_i32_1 = arith.constant 0 : i32
    return %c0_i32, %c0_i32_0 : i32, i32
  }
  func.func @transform_1(%arg0: i32) -> (i32, i32) {
    %c0_i32 = arith.constant 0 : i32
    %c0_i32_0 = arith.constant 0 : i32
    %c0_i32_1 = arith.constant 0 : i32
    return %c0_i32, %c0_i32_0 : i32, i32
  }
  func.func @transform_2(%arg0: i32) -> (i32, i32) {
    %c0_i32 = arith.constant 0 : i32
    %c0_i32_0 = arith.constant 0 : i32
    %c0_i32_1 = arith.constant 0 : i32
    return %c0_i32, %c0_i32_0 : i32, i32
  }
}

</mosaic_0001>

<llo_original>
// kernel: histo_generator_forward.6
$region0: #{histo_generator_forward.6}
  #allocation0 [shape = 'u32[]', space=smem, size = 0x4, offset = 0x4, fixed_abs, tag = 'smem constant byte address 0x4 - core index']
  #allocation1 [shape = 'u32[72,128]{1,0:T(1,128)}', space=vmem, size = 0x9000, scoped, tag = 'internal scratch']
  %s0 = inlined_call_operand.vmem [shape: f32[8,2], index: 0, kind: input, shape index: {}]
  %s1 = inlined_call_operand.vmem [shape: f32[1,2], index: 1, kind: input, shape index: {}]
  %s2 = inlined_call_operand.vmem [shape: bf16[2,16], index: 2, kind: input, shape index: {}]
  %s3 = inlined_call_operand.vmem [shape: f32[1,16], index: 3, kind: input, shape index: {}]
  %s4 = inlined_call_operand.vmem [shape: f32[8,16], index: 4, kind: output, shape index: {}]
  %s5 = sld [smem:[#allocation0]]
  $region26: #{histo_generator_forward.6} parent=0
    _
  %s7 = ssub.s32 1, %s5
  %s8 = scalar_select 0, %s7, %s5
  // Predicated region
  $region2: #{histo_generator_forward.6} parent=0 // pred_check
    _
  $region3: #{histo_generator_forward.6} parent=0 // pred_check_branch
    %10 = sbr.rel (0) target = $region5
  $region4: #{histo_generator_forward.6} parent=0 // pred_region
    _
  $region5: #{histo_generator_forward.6} parent=0 // pred_fallthru
    _
  // Predicated region
  $region6: #{histo_generator_forward.6} parent=0 // pred_check
    _
  $region7: #{histo_generator_forward.6} parent=0 // pred_check_branch
    %12 = sbr.rel (0) target = $region9
  $region8: #{histo_generator_forward.6} parent=0 // pred_region
    _
  $region9: #{histo_generator_forward.6} parent=0 // pred_fallthru
    _
  // Predicated region
  $region10: #{histo_generator_forward.6} parent=0 // pred_check
    _
  $region11: #{histo_generator_forward.6} parent=0 // pred_check_branch
    %14 = sbr.rel (0) target = $region13
  $region12: #{histo_generator_forward.6} parent=0 // pred_region
    _
  $region13: #{histo_generator_forward.6} parent=0 // pred_fallthru
    _
  // Predicated region
  $region14: #{histo_generator_forward.6} parent=0 // pred_check
    _
  $region15: #{histo_generator_forward.6} parent=0 // pred_check_branch
    %16 = sbr.rel (0) target = $region17
  $region16: #{histo_generator_forward.6} parent=0 // pred_region
    _
  $region17: #{histo_generator_forward.6} parent=0 // pred_fallthru
    _
  %v18 = vld [vmem:[%s0] sm:$0xff]
  %v19 = vpack.c.bf16 %v18, %v18
  %v20 = vld [vmem:[%s2] sm:$0x1]
  %v21 = vld [vmem:[%s3] sm:$0x1]
  %v23 = vperm.slane %v21, 0
  %vm25 = vcmask 15360
  %v27 = vsel %vm25, %v19, 0
  %vm29 = vcmask 1040384
  %v31 = vsel %vm29, %v20, 0
  %33 = vmatpush.bf16.msra.mxu0 0
  %34 = vmatpush.bf16.msra.mxu0 0
  %35 = vmatpush.bf16.msra.mxu0 0
  %36 = vmatpush.bf16.msra.mxu0 0
  %37 = vmatpush.bf16.msra.mxu0 0
  %38 = vmatpush.bf16.msra.mxu0 0
  %39 = vmatpush.bf16.msra.mxu0 0
  %40 = vmatpush.bf16.msra.mxu0 %v31
  %41 = vmatmul.bf16.gmra.mxu0 %v27
  %v42 = vpop.f32.mrf.mxu0
  %v43 = vadd.f32 %v23, %v42
  %v44 = vpop.f32.mrf.mxu0
  %45 = vdwg.mxu0
  %vm46 = vcmask 130048
  %47 = vst.msk [vmem:[%s4] sm:$0xff] %vm46, %v43
  // Predicated region
  $region18: #{histo_generator_forward.6} parent=0 // pred_check
    _
  $region19: #{histo_generator_forward.6} parent=0 // pred_check_branch
    %49 = sbr.rel (0) target = $region21
  $region20: #{histo_generator_forward.6} parent=0 // pred_region
    _
  $region21: #{histo_generator_forward.6} parent=0 // pred_fallthru
    _
  // Predicated region
  $region22: #{histo_generator_forward.6} parent=0 // pred_check
    _
  $region23: #{histo_generator_forward.6} parent=0 // pred_check_branch
    %51 = sbr.rel (0) target = $region25
  $region24: #{histo_generator_forward.6} parent=0 // pred_region
    _
  $region25: #{histo_generator_forward.6} parent=0 // pred_fallthru
    _

// kernel: histo_generator_forward.7
$region0: #{histo_generator_forward.7}
  #allocation0 [shape = 'u32[]', space=smem, size = 0x4, offset = 0x4, fixed_abs, tag = 'smem constant byte address 0x4 - core index']
  #allocation1 [shape = 'u32[72,128]{1,0:T(1,128)}', space=vmem, size = 0x9000, scoped, tag = 'internal scratch']
  %s0 = inlined_call_operand.vmem [shape: f32[8,32], index: 0, kind: input, shape index: {}]
  %s1 = inlined_call_operand.vmem [shape: f32[1,32], index: 1, kind: input, shape index: {}]
  %s2 = inlined_call_operand.hbm [shape: bf16[32,512], index: 2, kind: input, shape index: {}]
  %s3 = inlined_call_operand.vmem [shape: f32[1,512], index: 3, kind: input, shape index: {}]
  %s4 = inlined_call_operand.vmem [shape: f32[8,512], index: 4, kind: output, shape index: {}]
  %s5 = sld [smem:[#allocation0]]
  $region30: #{histo_generator_forward.7} parent=0
    _
  %s7 = ssub.s32 1, %s5
  %s8 = scalar_select 0, %s7, %s5
  $region1: #{histo_generator_forward.7} parent=0
    #allocation2 [shape = 'u8[32768]{0}', space=vmem, size = 0x8000, scoped, tag = 'input window, operand 2, single buffered']
    #allocation3 [shape = 's32[1]{0}', space=sflag, size = 0x4, scoped, tag = 'scoped memory for histo_generator_forward.7']
    %9 = vsyncpa [#allocation3], 0
    // Predicated region
    $region2: #{histo_generator_forward.7} parent=1 // pred_check
      _
    $region3: #{histo_generator_forward.7} parent=1 // pred_check_branch
      %11 = sbr.rel (0) target = $region5
    $region4: #{histo_generator_forward.7} parent=1 // pred_region
      _
    $region5: #{histo_generator_forward.7} parent=1 // pred_fallthru
      _
    // Predicated region
    $region6: #{histo_generator_forward.7} parent=1 // pred_check
      _
    $region7: #{histo_generator_forward.7} parent=1 // pred_check_branch
      %13 = sbr.rel (0) target = $region9
    $region8: #{histo_generator_forward.7} parent=1 // pred_region
      _
    $region9: #{histo_generator_forward.7} parent=1 // pred_fallthru
      _
    // Predicated region
    $region10: #{histo_generator_forward.7} parent=1 // pred_check
      _
    $region11: #{histo_generator_forward.7} parent=1 // pred_check_branch
      %15 = sbr.rel (0) target = $region13
    $region12: #{histo_generator_forward.7} parent=1 // pred_region
      %17 = vsyncadd [#allocation3], 0
      %s18 = sshll.u32 %s2, 4
      %s19 = int_to_ptr.hbm [resolvable:$true] %s18
      %s20 = sshll.u32 [#allocation2], 4
      %s21 = int_to_ptr.vmem [resolvable:$true] %s20
      %26 = dma.hbm_to_vmem [thread:$0]  %s19, 1024, %s21, [#allocation3], 256, 256, 16
    $region13: #{histo_generator_forward.7} parent=1 // pred_fallthru
      _
    // Predicated region
    $region14: #{histo_generator_forward.7} parent=1 // pred_check
      _
    $region15: #{histo_generator_forward.7} parent=1 // pred_check_branch
      %28 = sbr.rel (0) target = $region17
    $region16: #{histo_generator_forward.7} parent=1 // pred_region
      _
    $region17: #{histo_generator_forward.7} parent=1 // pred_fallthru
      _
    // Predicated region
    $region18: #{histo_generator_forward.7} parent=1 // pred_check
      _
    $region19: #{histo_generator_forward.7} parent=1 // pred_check_branch
      %30 = sbr.rel (0) target = $region21
    $region20: #{histo_generator_forward.7} parent=1 // pred_region
      %32 = dma.done [#allocation3], 1024
    $region21: #{histo_generator_forward.7} parent=1 // pred_fallthru
      _
    %v34 = vld [vmem:[%s0] sm:$0xff]
    %v35 = vpack.c.bf16 %v34, %v34
    %v36 = vld [vmem:[#allocation2] sm:$0xff]
    %v37 = vld [vmem:[#allocation2 + $0x8] sm:$0xff]
    %v38 = vld [vmem:[#allocation2 + $0x10] sm:$0xff]
    %v39 = vld [vmem:[#allocation2 + $0x18] sm:$0xff]
    %v40 = vld [vmem:[#allocation2 + $0x20] sm:$0xff]
    %v41 = vld [vmem:[#allocation2 + $0x28] sm:$0xff]
    %v42 = vld [vmem:[#allocation2 + $0x30] sm:$0xff]
    %v43 = vld [vmem:[#allocation2 + $0x38] sm:$0xff]
    %v52 = vunpack.c.l.b16 %v36
    %v53 = vunpack.c.h.b16 %v36
    %v54 = vunpack.c.l.b16 %v37
    %v55 = vunpack.c.h.b16 %v37
    %v56 = vunpack.c.l.b16 %v38
    %v57 = vunpack.c.h.b16 %v38
    %v58 = vunpack.c.l.b16 %v39
    %v59 = vunpack.c.h.b16 %v39
    %v60 = vunpack.c.l.b16 %v40
    %v61 = vunpack.c.h.b16 %v40
    %v62 = vunpack.c.l.b16 %v41
    %v63 = vunpack.c.h.b16 %v41
    %v64 = vunpack.c.l.b16 %v42
    %v65 = vunpack.c.h.b16 %v42
    %v66 = vunpack.c.l.b16 %v43
    %v67 = vunpack.c.h.b16 %v43
    %v68 = vpack.c.b16 %v56, %v52
    %v69 = vpack.c.b16 %v57, %v53
    %v70 = vpack.c.b16 %v58, %v54
    %v71 = vpack.c.b16 %v59, %v55
    %v72 = vpack.c.b16 %v64, %v60
    %v73 = vpack.c.b16 %v65, %v61
    %v74 = vpack.c.b16 %v66, %v62
    %v75 = vpack.c.b16 %v67, %v63
    %vm84 = vcmask 261120
    %v86 = vsel %vm84, %v35, 0
    %88 = vmatpush.bf16.msra.mxu0 0
    %89 = vmatpush.bf16.msra.mxu0 0
    %90 = vmatpush.bf16.msra.mxu0 0
    %91 = vmatpush.bf16.msra.mxu0 0
    %92 = vmatpush.bf16.msra.mxu0 0
    %93 = vmatpush.bf16.msra.mxu0 0
    %94 = vmatpush.bf16.msra.mxu0 %v72
    %95 = vmatpush.bf16.msra.mxu0 %v68
    %96 = vmatmul.bf16.gmra.mxu0 %v86
    %v97 = vpop.f32.mrf.mxu0
    %v98 = vadd.f32 0.0, %v97
    %v99 = vpop.f32.mrf.mxu0
    %100 = vdwg.mxu0
    %101 = vmatpush.bf16.msra.mxu0 0
    %102 = vmatpush.bf16.msra.mxu0 0
    %103 = vmatpush.bf16.msra.mxu0 0
    %104 = vmatpush.bf16.msra.mxu0 0
    %105 = vmatpush.bf16.msra.mxu0 0
    %106 = vmatpush.bf16.msra.mxu0 0
    %107 = vmatpush.bf16.msra.mxu0 %v73
    %108 = vmatpush.bf16.msra.mxu0 %v69
    %109 = vmatmul.bf16.gmra.mxu0 %v86
    %v110 = vpop.f32.mrf.mxu0
    %v111 = vadd.f32 0.0, %v110
    %v112 = vpop.f32.mrf.mxu0
    %113 = vdwg.mxu0
    %114 = vmatpush.bf16.msra.mxu0 0
    %115 = vmatpush.bf16.msra.mxu0 0
    %116 = vmatpush.bf16.msra.mxu0 0
    %117 = vmatpush.bf16.msra.mxu0 0
    %118 = vmatpush.bf16.msra.mxu0 0
    %119 = vmatpush.bf16.msra.mxu0 0
    %120 = vmatpush.bf16.msra.mxu0 %v74
    %121 = vmatpush.bf16.msra.mxu0 %v70
    %122 = vmatmul.bf16.gmra.mxu0 %v86
    %v123 = vpop.f32.mrf.mxu0
    %v124 = vadd.f32 0.0, %v123
    %v125 = vpop.f32.mrf.mxu0
    %126 = vdwg.mxu0
    %127 = vmatpush.bf16.msra.mxu0 0
    %128 = vmatpush.bf16.msra.mxu0 0
    %129 = vmatpush.bf16.msra.mxu0 0
    %130 = vmatpush.bf16.msra.mxu0 0
    %131 = vmatpush.bf16.msra.mxu0 0
    %132 = vmatpush.bf16.msra.mxu0 0
    %133 = vmatpush.bf16.msra.mxu0 %v75
    %134 = vmatpush.bf16.msra.mxu0 %v71
    %135 = vmatmul.bf16.gmra.mxu0 %v86
    %v136 = vpop.f32.mrf.mxu0
    %v137 = vadd.f32 0.0, %v136
    %v138 = vpop.f32.mrf.mxu0
    %139 = vdwg.mxu0
    %140 = vst [vmem:[%s4] sm:$0xff] %v98
    %141 = vst [vmem:[%s4 + $0x8] sm:$0xff] %v111
    %142 = vst [vmem:[%s4 + $0x10] sm:$0xff] %v124
    %143 = vst [vmem:[%s4 + $0x18] sm:$0xff] %v137
    // Predicated region
    $region22: #{histo_generator_forward.7} parent=1 // pred_check
      _
    $region23: #{histo_generator_forward.7} parent=1 // pred_check_branch
      %145 = sbr.rel (0) target = $region25
    $region24: #{histo_generator_forward.7} parent=1 // pred_region
      _
    $region25: #{histo_generator_forward.7} parent=1 // pred_fallthru
      _
    // Predicated region
    $region26: #{histo_generator_forward.7} parent=1 // pred_check
      _
    $region27: #{histo_generator_forward.7} parent=1 // pred_check_branch
      %147 = sbr.rel (0) target = $region29
    $region28: #{histo_generator_forward.7} parent=1 // pred_region
      _
    $region29: #{histo_generator_forward.7} parent=1 // pred_fallthru
      _
    %148 = vsyncpa [#allocation3], 1

// kernel: histo_generator_forward.8
$region0: #{histo_generator_forward.8}
  #allocation0 [shape = 'u32[]', space=smem, size = 0x4, offset = 0x4, fixed_abs, tag = 'smem constant byte address 0x4 - core index']
  #allocation1 [shape = 'u32[72,128]{1,0:T(1,128)}', space=vmem, size = 0x9000, scoped, tag = 'internal scratch']
  %s0 = inlined_call_operand.vmem [shape: f32[32,32], index: 0, kind: input, shape index: {}]
  %s1 = inlined_call_operand.vmem [shape: f32[1,32], index: 1, kind: input, shape index: {}]
  %s2 = inlined_call_operand.vmem [shape: bf16[32,256], index: 2, kind: input, shape index: {}]
  %s3 = inlined_call_operand.vmem [shape: f32[1,256], index: 3, kind: input, shape index: {}]
  %s4 = inlined_call_operand.vmem [shape: f32[32,256], index: 4, kind: output, shape index: {}]
  %s5 = sld [smem:[#allocation0]]
  $region26: #{histo_generator_forward.8} parent=0
    _
  %s7 = ssub.s32 1, %s5
  %s8 = scalar_select 0, %s7, %s5
  // Predicated region
  $region2: #{histo_generator_forward.8} parent=0 // pred_check
    _
  $region3: #{histo_generator_forward.8} parent=0 // pred_check_branch
    %10 = sbr.rel (0) target = $region5
  $region4: #{histo_generator_forward.8} parent=0 // pred_region
    _
  $region5: #{histo_generator_forward.8} parent=0 // pred_fallthru
    _
  // Predicated region
  $region6: #{histo_generator_forward.8} parent=0 // pred_check
    _
  $region7: #{histo_generator_forward.8} parent=0 // pred_check_branch
    %12 = sbr.rel (0) target = $region9
  $region8: #{histo_generator_forward.8} parent=0 // pred_region
    _
  $region9: #{histo_generator_forward.8} parent=0 // pred_fallthru
    _
  // Predicated region
  $region10: #{histo_generator_forward.8} parent=0 // pred_check
    _
  $region11: #{histo_generator_forward.8} parent=0 // pred_check_branch
    %14 = sbr.rel (0) target = $region13
  $region12: #{histo_generator_forward.8} parent=0 // pred_region
    _
  $region13: #{histo_generator_forward.8} parent=0 // pred_fallthru
    _
  // Predicated region
  $region14: #{histo_generator_forward.8} parent=0 // pred_check
    _
  $region15: #{histo_generator_forward.8} parent=0 // pred_check_branch
    %16 = sbr.rel (0) target = $region17
  $region16: #{histo_generator_forward.8} parent=0 // pred_region
    _
  $region17: #{histo_generator_forward.8} parent=0 // pred_fallthru
    _
  %v18 = vld [vmem:[%s0] sm:$0xff]
  %v19 = vld [vmem:[%s0 + $0x8] sm:$0xff]
  %v20 = vld [vmem:[%s0 + $0x10] sm:$0xff]
  %v21 = vld [vmem:[%s0 + $0x18] sm:$0xff]
  %v22 = vld [vmem:[%s1] sm:$0x1]
  %v24 = vperm.slane %v22, 0
  %v26 = vadd.f32 %v18, %v24
  %v27 = vadd.f32 %v19, %v24
  %v28 = vadd.f32 %v20, %v24
  %v29 = vadd.f32 %v21, %v24
  %v30 = vmax.f32 %v26, 0.0
  %v31 = vmax.f32 %v27, 0.0
  %v32 = vmax.f32 %v28, 0.0
  %v33 = vmax.f32 %v29, 0.0
  %v34 = vpack.c.bf16 %v31, %v30
  %v35 = vpack.c.bf16 %v33, %v32
  %v36 = vld [vmem:[%s2] sm:$0xff]
  %v37 = vld [vmem:[%s2 + $0x8] sm:$0xff]
  %v38 = vld [vmem:[%s2 + $0x10] sm:$0xff]
  %v39 = vld [vmem:[%s2 + $0x18] sm:$0xff]
  %v44 = vunpack.c.l.b16 %v36
  %v45 = vunpack.c.h.b16 %v36
  %v46 = vunpack.c.l.b16 %v37
  %v47 = vunpack.c.h.b16 %v37
  %v48 = vunpack.c.l.b16 %v38
  %v49 = vunpack.c.h.b16 %v38
  %v50 = vunpack.c.l.b16 %v39
  %v51 = vunpack.c.h.b16 %v39
  %v52 = vpack.c.b16 %v46, %v44
  %v53 = vpack.c.b16 %v47, %v45
  %v54 = vpack.c.b16 %v50, %v48
  %v55 = vpack.c.b16 %v51, %v49
  %vm60 = vcmask 261120
  %v62 = vsel %vm60, %v34, 0
  %v65 = vsel %vm60, %v35, 0
  %67 = vmatpush.bf16.msra.mxu0 0
  %68 = vmatpush.bf16.msra.mxu0 0
  %69 = vmatpush.bf16.msra.mxu0 0
  %70 = vmatpush.bf16.msra.mxu0 0
  %71 = vmatpush.bf16.msra.mxu0 0
  %72 = vmatpush.bf16.msra.mxu0 0
  %73 = vmatpush.bf16.msra.mxu0 %v54
  %74 = vmatpush.bf16.msra.mxu0 %v52
  %75 = vmatmul.bf16.gmra.mxu0 %v62
  %v76 = vpop.f32.mrf.mxu0
  %v77 = vadd.f32 0.0, %v76
  %v78 = vpop.f32.mrf.mxu0
  %v79 = vadd.f32 0.0, %v78
  %80 = vmatmul.bf16.gmra.mxu0 %v65
  %v81 = vpop.f32.mrf.mxu0
  %v82 = vadd.f32 0.0, %v81
  %v83 = vpop.f32.mrf.mxu0
  %v84 = vadd.f32 0.0, %v83
  %85 = vdwg.mxu0
  %86 = vmatpush.bf16.msra.mxu0 0
  %87 = vmatpush.bf16.msra.mxu0 0
  %88 = vmatpush.bf16.msra.mxu0 0
  %89 = vmatpush.bf16.msra.mxu0 0
  %90 = vmatpush.bf16.msra.mxu0 0
  %91 = vmatpush.bf16.msra.mxu0 0
  %92 = vmatpush.bf16.msra.mxu0 %v55
  %93 = vmatpush.bf16.msra.mxu0 %v53
  %94 = vmatmul.bf16.gmra.mxu0 %v62
  %v95 = vpop.f32.mrf.mxu0
  %v96 = vadd.f32 0.0, %v95
  %v97 = vpop.f32.mrf.mxu0
  %v98 = vadd.f32 0.0, %v97
  %99 = vmatmul.bf16.gmra.mxu0 %v65
  %v100 = vpop.f32.mrf.mxu0
  %v101 = vadd.f32 0.0, %v100
  %v102 = vpop.f32.mrf.mxu0
  %v103 = vadd.f32 0.0, %v102
  %104 = vdwg.mxu0
  %105 = vst [vmem:[%s4] sm:$0xff] %v77
  %106 = vst [vmem:[%s4 + $0x8] sm:$0xff] %v96
  %107 = vst [vmem:[%s4 + $0x10] sm:$0xff] %v79
  %108 = vst [vmem:[%s4 + $0x18] sm:$0xff] %v98
  %109 = vst [vmem:[%s4 + $0x20] sm:$0xff] %v82
  %110 = vst [vmem:[%s4 + $0x28] sm:$0xff] %v101
  %111 = vst [vmem:[%s4 + $0x30] sm:$0xff] %v84
  %112 = vst [vmem:[%s4 + $0x38] sm:$0xff] %v103
  // Predicated region
  $region18: #{histo_generator_forward.8} parent=0 // pred_check
    _
  $region19: #{histo_generator_forward.8} parent=0 // pred_check_branch
    %114 = sbr.rel (0) target = $region21
  $region20: #{histo_generator_forward.8} parent=0 // pred_region
    _
  $region21: #{histo_generator_forward.8} parent=0 // pred_fallthru
    _
  // Predicated region
  $region22: #{histo_generator_forward.8} parent=0 // pred_check
    _
  $region23: #{histo_generator_forward.8} parent=0 // pred_check_branch
    %116 = sbr.rel (0) target = $region25
  $region24: #{histo_generator_forward.8} parent=0 // pred_region
    _
  $region25: #{histo_generator_forward.8} parent=0 // pred_fallthru
    _

// kernel: histo_generator_forward.9
$region0: #{histo_generator_forward.9}
  #allocation0 [shape = 'u32[]', space=smem, size = 0x4, offset = 0x4, fixed_abs, tag = 'smem constant byte address 0x4 - core index']
  #allocation1 [shape = 'u32[72,128]{1,0:T(1,128)}', space=vmem, size = 0x9000, scoped, tag = 'internal scratch']
  %s0 = inlined_call_operand.vmem [shape: f32[128,16], index: 0, kind: input, shape index: {}]
  %s1 = inlined_call_operand.vmem [shape: f32[1,16], index: 1, kind: input, shape index: {}]
  %s2 = inlined_call_operand.vmem [shape: bf16[16,128], index: 2, kind: input, shape index: {}]
  %s3 = inlined_call_operand.vmem [shape: f32[1,128], index: 3, kind: input, shape index: {}]
  %s4 = inlined_call_operand.vmem [shape: f32[128,128], index: 4, kind: output, shape index: {}]
  %s5 = sld [smem:[#allocation0]]
  $region26: #{histo_generator_forward.9} parent=0
    _
  %s7 = ssub.s32 1, %s5
  %s8 = scalar_select 0, %s7, %s5
  // Predicated region
  $region2: #{histo_generator_forward.9} parent=0 // pred_check
    _
  $region3: #{histo_generator_forward.9} parent=0 // pred_check_branch
    %10 = sbr.rel (0) target = $region5
  $region4: #{histo_generator_forward.9} parent=0 // pred_region
    _
  $region5: #{histo_generator_forward.9} parent=0 // pred_fallthru
    _
  // Predicated region
  $region6: #{histo_generator_forward.9} parent=0 // pred_check
    _
  $region7: #{histo_generator_forward.9} parent=0 // pred_check_branch
    %12 = sbr.rel (0) target = $region9
  $region8: #{histo_generator_forward.9} parent=0 // pred_region
    _
  $region9: #{histo_generator_forward.9} parent=0 // pred_fallthru
    _
  // Predicated region
  $region10: #{histo_generator_forward.9} parent=0 // pred_check
    _
  $region11: #{histo_generator_forward.9} parent=0 // pred_check_branch
    %14 = sbr.rel (0) target = $region13
  $region12: #{histo_generator_forward.9} parent=0 // pred_region
    _
  $region13: #{histo_generator_forward.9} parent=0 // pred_fallthru
    _
  // Predicated region
  $region14: #{histo_generator_forward.9} parent=0 // pred_check
    _
  $region15: #{histo_generator_forward.9} parent=0 // pred_check_branch
    %16 = sbr.rel (0) target = $region17
  $region16: #{histo_generator_forward.9} parent=0 // pred_region
    _
  $region17: #{histo_generator_forward.9} parent=0 // pred_fallthru
    _
  %v18 = vld [vmem:[%s0] sm:$0xff]
  %v19 = vld [vmem:[%s0 + $0x8] sm:$0xff]
  %v20 = vld [vmem:[%s0 + $0x10] sm:$0xff]
  %v21 = vld [vmem:[%s0 + $0x18] sm:$0xff]
  %v22 = vld [vmem:[%s0 + $0x20] sm:$0xff]
  %v23 = vld [vmem:[%s0 + $0x28] sm:$0xff]
  %v24 = vld [vmem:[%s0 + $0x30] sm:$0xff]
  %v25 = vld [vmem:[%s0 + $0x38] sm:$0xff]
  %v26 = vld [vmem:[%s0 + $0x40] sm:$0xff]
  %v27 = vld [vmem:[%s0 + $0x48] sm:$0xff]
  %v28 = vld [vmem:[%s0 + $0x50] sm:$0xff]
  %v29 = vld [vmem:[%s0 + $0x58] sm:$0xff]
  %v30 = vld [vmem:[%s0 + $0x60] sm:$0xff]
  %v31 = vld [vmem:[%s0 + $0x68] sm:$0xff]
  %v32 = vld [vmem:[%s0 + $0x70] sm:$0xff]
  %v33 = vld [vmem:[%s0 + $0x78] sm:$0xff]
  %v34 = vld [vmem:[%s1] sm:$0x1]
  %v36 = vperm.slane %v34, 0
  %v38 = vadd.f32 %v18, %v36
  %v39 = vadd.f32 %v19, %v36
  %v40 = vadd.f32 %v20, %v36
  %v41 = vadd.f32 %v21, %v36
  %v42 = vadd.f32 %v22, %v36
  %v43 = vadd.f32 %v23, %v36
  %v44 = vadd.f32 %v24, %v36
  %v45 = vadd.f32 %v25, %v36
  %v46 = vadd.f32 %v26, %v36
  %v47 = vadd.f32 %v27, %v36
  %v48 = vadd.f32 %v28, %v36
  %v49 = vadd.f32 %v29, %v36
  %v50 = vadd.f32 %v30, %v36
  %v51 = vadd.f32 %v31, %v36
  %v52 = vadd.f32 %v32, %v36
  %v53 = vadd.f32 %v33, %v36
  %v54 = vmax.f32 %v38, 0.0
  %v55 = vmax.f32 %v39, 0.0
  %v56 = vmax.f32 %v40, 0.0
  %v57 = vmax.f32 %v41, 0.0
  %v58 = vmax.f32 %v42, 0.0
  %v59 = vmax.f32 %v43, 0.0
  %v60 = vmax.f32 %v44, 0.0
  %v61 = vmax.f32 %v45, 0.0
  %v62 = vmax.f32 %v46, 0.0
  %v63 = vmax.f32 %v47, 0.0
  %v64 = vmax.f32 %v48, 0.0
  %v65 = vmax.f32 %v49, 0.0
  %v66 = vmax.f32 %v50, 0.0
  %v67 = vmax.f32 %v51, 0.0
  %v68 = vmax.f32 %v52, 0.0
  %v69 = vmax.f32 %v53, 0.0
  %v70 = vpack.c.bf16 %v55, %v54
  %v71 = vpack.c.bf16 %v57, %v56
  %v72 = vpack.c.bf16 %v59, %v58
  %v73 = vpack.c.bf16 %v61, %v60
  %v74 = vpack.c.bf16 %v63, %v62
  %v75 = vpack.c.bf16 %v65, %v64
  %v76 = vpack.c.bf16 %v67, %v66
  %v77 = vpack.c.bf16 %v69, %v68
  %v78 = vld [vmem:[%s2] sm:$0xf]
  %v79 = vld [vmem:[%s2 + $0x4] sm:$0xf]
  %v82 = vunpack.c.l.b16 %v78
  %v83 = vunpack.c.l.b16 %v79
  %v84 = vpack.c.b16 %v83, %v82
  %vm86 = vcmask 130048
  %v88 = vsel %vm86, %v70, 0
  %v91 = vsel %vm86, %v71, 0
  %v94 = vsel %vm86, %v72, 0
  %v97 = vsel %vm86, %v73, 0
  %v100 = vsel %vm86, %v74, 0
  %v103 = vsel %vm86, %v75, 0
  %v106 = vsel %vm86, %v76, 0
  %v109 = vsel %vm86, %v77, 0
  %111 = vmatpush.bf16.msra.mxu0 0
  %112 = vmatpush.bf16.msra.mxu0 0
  %113 = vmatpush.bf16.msra.mxu0 0
  %114 = vmatpush.bf16.msra.mxu0 0
  %115 = vmatpush.bf16.msra.mxu0 0
  %116 = vmatpush.bf16.msra.mxu0 0
  %117 = vmatpush.bf16.msra.mxu0 0
  %118 = vmatpush.bf16.msra.mxu0 %v84
  %119 = vmatmul.bf16.gmra.mxu0 %v88
  %v120 = vpop.f32.mrf.mxu0
  %v121 = vadd.f32 0.0, %v120
  %v122 = vpop.f32.mrf.mxu0
  %v123 = vadd.f32 0.0, %v122
  %124 = vmatmul.bf16.gmra.mxu0 %v91
  %v125 = vpop.f32.mrf.mxu0
  %v126 = vadd.f32 0.0, %v125
  %v127 = vpop.f32.mrf.mxu0
  %v128 = vadd.f32 0.0, %v127
  %129 = vmatmul.bf16.gmra.mxu0 %v94
  %v130 = vpop.f32.mrf.mxu0
  %v131 = vadd.f32 0.0, %v130
  %v132 = vpop.f32.mrf.mxu0
  %v133 = vadd.f32 0.0, %v132
  %134 = vmatmul.bf16.gmra.mxu0 %v97
  %v135 = vpop.f32.mrf.mxu0
  %v136 = vadd.f32 0.0, %v135
  %v137 = vpop.f32.mrf.mxu0
  %v138 = vadd.f32 0.0, %v137
  %139 = vmatmul.bf16.gmra.mxu0 %v100
  %v140 = vpop.f32.mrf.mxu0
  %v141 = vadd.f32 0.0, %v140
  %v142 = vpop.f32.mrf.mxu0
  %v143 = vadd.f32 0.0, %v142
  %144 = vmatmul.bf16.gmra.mxu0 %v103
  %v145 = vpop.f32.mrf.mxu0
  %v146 = vadd.f32 0.0, %v145
  %v147 = vpop.f32.mrf.mxu0
  %v148 = vadd.f32 0.0, %v147
  %149 = vmatmul.bf16.gmra.mxu0 %v106
  %v150 = vpop.f32.mrf.mxu0
  %v151 = vadd.f32 0.0, %v150
  %v152 = vpop.f32.mrf.mxu0
  %v153 = vadd.f32 0.0, %v152
  %154 = vmatmul.bf16.gmra.mxu0 %v109
  %v155 = vpop.f32.mrf.mxu0
  %v156 = vadd.f32 0.0, %v155
  %v157 = vpop.f32.mrf.mxu0
  %v158 = vadd.f32 0.0, %v157
  %159 = vdwg.mxu0
  %160 = vst [vmem:[%s4] sm:$0xff] %v121
  %161 = vst [vmem:[%s4 + $0x8] sm:$0xff] %v123
  %162 = vst [vmem:[%s4 + $0x10] sm:$0xff] %v126
  %163 = vst [vmem:[%s4 + $0x18] sm:$0xff] %v128
  %164 = vst [vmem:[%s4 + $0x20] sm:$0xff] %v131
  %165 = vst [vmem:[%s4 + $0x28] sm:$0xff] %v133
  %166 = vst [vmem:[%s4 + $0x30] sm:$0xff] %v136
  %167 = vst [vmem:[%s4 + $0x38] sm:$0xff] %v138
  %168 = vst [vmem:[%s4 + $0x40] sm:$0xff] %v141
  %169 = vst [vmem:[%s4 + $0x48] sm:$0xff] %v143
  %170 = vst [vmem:[%s4 + $0x50] sm:$0xff] %v146
  %171 = vst [vmem:[%s4 + $0x58] sm:$0xff] %v148
  %172 = vst [vmem:[%s4 + $0x60] sm:$0xff] %v151
  %173 = vst [vmem:[%s4 + $0x68] sm:$0xff] %v153
  %174 = vst [vmem:[%s4 + $0x70] sm:$0xff] %v156
  %175 = vst [vmem:[%s4 + $0x78] sm:$0xff] %v158
  // Predicated region
  $region18: #{histo_generator_forward.9} parent=0 // pred_check
    _
  $region19: #{histo_generator_forward.9} parent=0 // pred_check_branch
    %177 = sbr.rel (0) target = $region21
  $region20: #{histo_generator_forward.9} parent=0 // pred_region
    _
  $region21: #{histo_generator_forward.9} parent=0 // pred_fallthru
    _
  // Predicated region
  $region22: #{histo_generator_forward.9} parent=0 // pred_check
    _
  $region23: #{histo_generator_forward.9} parent=0 // pred_check_branch
    %179 = sbr.rel (0) target = $region25
  $region24: #{histo_generator_forward.9} parent=0 // pred_region
    _
  $region25: #{histo_generator_forward.9} parent=0 // pred_fallthru
    _

// kernel: histo_generator_forward.10
$region0: #{histo_generator_forward.10}
  #allocation0 [shape = 'u32[]', space=smem, size = 0x4, offset = 0x4, fixed_abs, tag = 'smem constant byte address 0x4 - core index']
  #allocation1 [shape = 'u32[72,128]{1,0:T(1,128)}', space=vmem, size = 0x9000, scoped, tag = 'internal scratch']
  %s0 = inlined_call_operand.vmem [shape: f32[512,8], index: 0, kind: input, shape index: {}]
  %s1 = inlined_call_operand.vmem [shape: f32[1,8], index: 1, kind: input, shape index: {}]
  %s2 = inlined_call_operand.vmem [shape: bf16[8,48], index: 2, kind: input, shape index: {}]
  %s3 = inlined_call_operand.vmem [shape: f32[1,48], index: 3, kind: input, shape index: {}]
  %s4 = inlined_call_operand.vmem [shape: f32[512,48], index: 4, kind: output, shape index: {}]
  %s5 = sld [smem:[#allocation0]]
  $region49: #{histo_generator_forward.10} parent=0
    _
  %s7 = ssub.s32 1, %s5
  %s8 = scalar_select 0, %s7, %s5
  loop: start=0, step=1, limit=6
  $region2: #{histo_generator_forward.10} parent=0 // loop_pre_header
    _
  $region3: #{histo_generator_forward.10} parent=0 // loop_header
    %s10 = sphi 0, %s14
    %p11 = scmp.ge.s32.totalorder %s10, 6
    %s20 = sphi 0, %s22
    %s23 = sphi 0, %s20
    %s24 = sphi 0, %s23
    %s40 = sphi 0, %s24
    %s44 = sphi 0, %s44
    %s46 = sphi 0, %s44
    %s47 = sphi 0, %s46
    %s61 = sphi 0, %s47
    %s65 = sphi 0, %s65
    %s67 = sphi 0, %s65
    %s68 = sphi 0, %s67
    %s82 = sphi 0, %s68
    %s86 = sphi 0, %s86
    %s88 = sphi 0, %s86
    %s89 = sphi 0, %s88
    %s103 = sphi 0, %s89
    %s109 = sphi 0, %s111
    %s112 = sphi 0, %s109
    %s113 = sphi 0, %s112
    %s129 = sphi 0, %s113
  $region4: #{histo_generator_forward.10} parent=0 // loop_header_branch
    %13 = sbr.rel (%p11) target = $region8
  $region5: #{histo_generator_forward.10} parent=0 // loop_body
    %s15 = ssub.s32 %s10, 1
    %s16 = ssub.s32 %s10, 2
    %s17 = sadd.s32 %s10, 1
    %s18 = ssub.s32 %s10, %s17
    %p19 = scmp.eq.s32.totalorder %s18, 0
    %s21 = sadd.s32 %s20, 1
    %s22 = scalar_select %p19, %s20, %s21
    %p25 = pneg %p19
    %p26 = scmp.eq.s32.totalorder %s10, 3
    %p27 = por %p25, %p26
    %p28 = scmp.ne.s32.totalorder %s20, %s23
    %p29 = scmp.eq.s32.totalorder %s10, 0
    %p30 = por %p28, %p29
    %p31 = scmp.ne.s32.totalorder %s20, %s23
    %p32 = scmp.eq.s32.totalorder %s15, 3
    %p33 = por %p31, %p32
    %p34 = scmp.ne.s32.totalorder %s23, %s24
    %p35 = scmp.eq.s32.totalorder %s15, 0
    %p36 = por %p34, %p35
    %p37 = scmp.ne.s32.totalorder %s23, %s24
    %p38 = scmp.eq.s32.totalorder %s16, 3
    %p39 = por %p37, %p38
    %p41 = scmp.ne.s32.totalorder %s24, %s40
    %p42 = scmp.eq.s32.totalorder %s16, 0
    %p43 = por %p41, %p42
    %s45 = sadd.s32 %s44, 1
    %p48 = scmp.eq.s32.totalorder %s10, 3
    %p49 = scmp.ne.s32.totalorder %s44, %s46
    %p50 = scmp.eq.s32.totalorder %s10, 0
    %p51 = por %p49, %p50
    %p52 = scmp.ne.s32.totalorder %s44, %s46
    %p53 = scmp.eq.s32.totalorder %s15, 3
    %p54 = por %p52, %p53
    %p55 = scmp.ne.s32.totalorder %s46, %s47
    %p56 = scmp.eq.s32.totalorder %s15, 0
    %p57 = por %p55, %p56
    %p58 = scmp.ne.s32.totalorder %s46, %s47
    %p59 = scmp.eq.s32.totalorder %s16, 3
    %p60 = por %p58, %p59
    %p62 = scmp.ne.s32.totalorder %s47, %s61
    %p63 = scmp.eq.s32.totalorder %s16, 0
    %p64 = por %p62, %p63
    %s66 = sadd.s32 %s65, 1
    %p69 = scmp.eq.s32.totalorder %s10, 3
    %p70 = scmp.ne.s32.totalorder %s65, %s67
    %p71 = scmp.eq.s32.totalorder %s10, 0
    %p72 = por %p70, %p71
    %p73 = scmp.ne.s32.totalorder %s65, %s67
    %p74 = scmp.eq.s32.totalorder %s15, 3
    %p75 = por %p73, %p74
    %p76 = scmp.ne.s32.totalorder %s67, %s68
    %p77 = scmp.eq.s32.totalorder %s15, 0
    %p78 = por %p76, %p77
    %p79 = scmp.ne.s32.totalorder %s67, %s68
    %p80 = scmp.eq.s32.totalorder %s16, 3
    %p81 = por %p79, %p80
    %p83 = scmp.ne.s32.totalorder %s68, %s82
    %p84 = scmp.eq.s32.totalorder %s16, 0
    %p85 = por %p83, %p84
    %s87 = sadd.s32 %s86, 1
    %p90 = scmp.eq.s32.totalorder %s10, 3
    %p91 = scmp.ne.s32.totalorder %s86, %s88
    %p92 = scmp.eq.s32.totalorder %s10, 0
    %p93 = por %p91, %p92
    %p94 = scmp.ne.s32.totalorder %s86, %s88
    %p95 = scmp.eq.s32.totalorder %s15, 3
    %p96 = por %p94, %p95
    %p97 = scmp.ne.s32.totalorder %s88, %s89
    %p98 = scmp.eq.s32.totalorder %s15, 0
    %p99 = por %p97, %p98
    %p100 = scmp.ne.s32.totalorder %s88, %s89
    %p101 = scmp.eq.s32.totalorder %s16, 3
    %p102 = por %p100, %p101
    %p104 = scmp.ne.s32.totalorder %s89, %s103
    %p105 = scmp.eq.s32.totalorder %s16, 0
    %p106 = por %p104, %p105
    %s107 = ssub.s32 %s10, %s17
    %p108 = scmp.eq.s32.totalorder %s107, 0
    %s110 = sadd.s32 %s109, 1
    %s111 = scalar_select %p108, %s109, %s110
    %p114 = pneg %p108
    %p115 = scmp.eq.s32.totalorder %s10, 3
    %p116 = por %p114, %p115
    %p117 = scmp.ne.s32.totalorder %s109, %s112
    %p118 = scmp.eq.s32.totalorder %s10, 0
    %p119 = por %p117, %p118
    %p120 = scmp.ne.s32.totalorder %s109, %s112
    %p121 = scmp.eq.s32.totalorder %s15, 3
    %p122 = por %p120, %p121
    %p123 = scmp.ne.s32.totalorder %s112, %s113
    %p124 = scmp.eq.s32.totalorder %s15, 0
    %p125 = por %p123, %p124
    %p126 = scmp.ne.s32.totalorder %s112, %s113
    %p127 = scmp.eq.s32.totalorder %s16, 3
    %p128 = por %p126, %p127
    %p130 = scmp.ne.s32.totalorder %s113, %s129
    %p131 = scmp.eq.s32.totalorder %s16, 0
    %p132 = por %p130, %p131
    %p133 = scmp.le.s32.totalorder 1, %s10
    %p134 = scmp.lt.s32.totalorder %s10, 5
    %p135 = pnand %p133, %p134
    %p136 = pneg %p135
    // Predicated region
    $region9: #{histo_generator_forward.10} parent=5 // pred_check
      _
    $region10: #{histo_generator_forward.10} parent=5 // pred_check_branch
      %138 = sbr.rel (%p135) target = $region12
    $region11: #{histo_generator_forward.10} parent=5 // pred_region
      %s139 = ssub.s32 %s10, 1
      // Predicated region
      $region13: #{histo_generator_forward.10} parent=11 // pred_check
        %p140 = pneg %p57
      $region14: #{histo_generator_forward.10} parent=11 // pred_check_branch
        %142 = sbr.rel (%p140) target = $region16
      $region15: #{histo_generator_forward.10} parent=11 // pred_region
        _
      $region16: #{histo_generator_forward.10} parent=11 // pred_fallthru
        _
      // Predicated region
      $region17: #{histo_generator_forward.10} parent=11 // pred_check
        %p143 = pneg %p78
      $region18: #{histo_generator_forward.10} parent=11 // pred_check_branch
        %145 = sbr.rel (%p143) target = $region20
      $region19: #{histo_generator_forward.10} parent=11 // pred_region
        _
      $region20: #{histo_generator_forward.10} parent=11 // pred_fallthru
        _
      // Predicated region
      $region21: #{histo_generator_forward.10} parent=11 // pred_check
        %p146 = pneg %p99
      $region22: #{histo_generator_forward.10} parent=11 // pred_check_branch
        %148 = sbr.rel (%p146) target = $region24
      $region23: #{histo_generator_forward.10} parent=11 // pred_region
        _
      $region24: #{histo_generator_forward.10} parent=11 // pred_fallthru
        _
    $region12: #{histo_generator_forward.10} parent=5 // pred_fallthru
      _
    %p149 = scmp.lt.s32.totalorder %s10, 4
    // Predicated region
    $region25: #{histo_generator_forward.10} parent=5 // pred_check
      %p150 = pneg %p149
    $region26: #{histo_generator_forward.10} parent=5 // pred_check_branch
      %152 = sbr.rel (%p150) target = $region28
    $region27: #{histo_generator_forward.10} parent=5 // pred_region
      // Predicated region
      $region29: #{histo_generator_forward.10} parent=27 // pred_check
        %p153 = pneg %p30
      $region30: #{histo_generator_forward.10} parent=27 // pred_check_branch
        %155 = sbr.rel (%p153) target = $region32
      $region31: #{histo_generator_forward.10} parent=27 // pred_region
        %s156 = smul.u32 16, %s10
        %p157 = scmp.lt.s32.totalorder %s156, 63
        %s158 = scalar_select %p157, %s156, 63
        %s159 = smul.addr %s158, 8
        %s160 = scalar_lea.vmem %s0, %s159
        %s161 = smul.u32 16, %s10
      $region32: #{histo_generator_forward.10} parent=27 // pred_fallthru
        _
    $region28: #{histo_generator_forward.10} parent=5 // pred_fallthru
      _
    %p162 = scmp.le.s32.totalorder 1, %s10
    %p163 = scmp.lt.s32.totalorder %s10, 5
    %p164 = pnand %p162, %p163
    %p165 = pneg %p164
    // Predicated region
    $region33: #{histo_generator_forward.10} parent=5 // pred_check
      _
    $region34: #{histo_generator_forward.10} parent=5 // pred_check_branch
      %167 = sbr.rel (%p164) target = $region36
    $region35: #{histo_generator_forward.10} parent=5 // pred_region
      %s168 = ssub.s32 %s10, 1
      %s169 = smul.u32 16, %s15
      %p170 = scmp.lt.s32.totalorder %s169, 63
      %s171 = scalar_select %p170, %s169, 63
      %s172 = smul.addr %s171, 8
      %s173 = scalar_lea.vmem %s0, %s172
      %p174 = pneg %p36
      %p175 = pneg %p33
      %p176 = pneg %p57
      %p177 = pneg %p54
      %p178 = pneg %p78
      %p179 = pneg %p75
      %p180 = pneg %p99
      %p181 = pneg %p96
      %p182 = pneg %p125
      %p183 = pneg %p122
      %s184 = smul.u32 16, %s15
      %p185 = scmp.lt.s32.totalorder %s184, 63
      %s186 = scalar_select %p185, %s184, 63
      %s187 = smul.addr %s186, 8
      %s188 = scalar_lea.vmem %s4, %s187
      %s189 = smul.u32 16, %s15
      %p190 = scmp.lt.s32.totalorder %s189, 63
      %s191 = scalar_select %p190, %s189, 63
      %s192 = smul.addr %s191, 8
      %s193 = scalar_lea.vmem %s0, %s192
      %s194 = smul.u32 16, %s15
      %s195 = smul.u32 16, %s15
      %p196 = scmp.lt.s32.totalorder %s195, 63
      %s197 = scalar_select %p196, %s195, 63
      %s198 = smul.addr %s197, 8
      %s199 = scalar_lea.vmem %s4, %s198
      %s200 = smul.u32 16, %s15
      %v202 = vld [vmem:[%s193] sm:$0xff]
      %v203 = vld [vmem:[%s193 + $0x8] sm:$0xff]
      %v204 = vld [vmem:[%s193 + $0x10] sm:$0xff]
      %v205 = vld [vmem:[%s193 + $0x18] sm:$0xff]
      %v206 = vld [vmem:[%s193 + $0x20] sm:$0xff]
      %v207 = vld [vmem:[%s193 + $0x28] sm:$0xff]
      %v208 = vld [vmem:[%s193 + $0x30] sm:$0xff]
      %v209 = vld [vmem:[%s193 + $0x38] sm:$0xff]
      %v210 = vld [vmem:[%s193 + $0x40] sm:$0xff]
      %v211 = vld [vmem:[%s193 + $0x48] sm:$0xff]
      %v212 = vld [vmem:[%s193 + $0x50] sm:$0xff]
      %v213 = vld [vmem:[%s193 + $0x58] sm:$0xff]
      %v214 = vld [vmem:[%s193 + $0x60] sm:$0xff]
      %v215 = vld [vmem:[%s193 + $0x68] sm:$0xff]
      %v216 = vld [vmem:[%s193 + $0x70] sm:$0xff]
      %v217 = vld [vmem:[%s193 + $0x78] sm:$0xff]
      %v218 = vld [vmem:[%s1] sm:$0x1]
      %v220 = vperm.slane %v218, 0
      %v222 = vadd.f32 %v202, %v220
      %v223 = vadd.f32 %v203, %v220
      %v224 = vadd.f32 %v204, %v220
      %v225 = vadd.f32 %v205, %v220
      %v226 = vadd.f32 %v206, %v220
      %v227 = vadd.f32 %v207, %v220
      %v228 = vadd.f32 %v208, %v220
      %v229 = vadd.f32 %v209, %v220
      %v230 = vadd.f32 %v210, %v220
      %v231 = vadd.f32 %v211, %v220
      %v232 = vadd.f32 %v212, %v220
      %v233 = vadd.f32 %v213, %v220
      %v234 = vadd.f32 %v214, %v220
      %v235 = vadd.f32 %v215, %v220
      %v236 = vadd.f32 %v216, %v220
      %v237 = vadd.f32 %v217, %v220
      %v238 = vmax.f32 %v222, 0.0
      %v239 = vmax.f32 %v223, 0.0
      %v240 = vmax.f32 %v224, 0.0
      %v241 = vmax.f32 %v225, 0.0
      %v242 = vmax.f32 %v226, 0.0
      %v243 = vmax.f32 %v227, 0.0
      %v244 = vmax.f32 %v228, 0.0
      %v245 = vmax.f32 %v229, 0.0
      %v246 = vmax.f32 %v230, 0.0
      %v247 = vmax.f32 %v231, 0.0
      %v248 = vmax.f32 %v232, 0.0
      %v249 = vmax.f32 %v233, 0.0
      %v250 = vmax.f32 %v234, 0.0
      %v251 = vmax.f32 %v235, 0.0
      %v252 = vmax.f32 %v236, 0.0
      %v253 = vmax.f32 %v237, 0.0
      %v254 = vpack.c.bf16 %v239, %v238
      %v255 = vpack.c.bf16 %v241, %v240
      %v256 = vpack.c.bf16 %v243, %v242
      %v257 = vpack.c.bf16 %v245, %v244
      %v258 = vpack.c.bf16 %v247, %v246
      %v259 = vpack.c.bf16 %v249, %v248
      %v260 = vpack.c.bf16 %v251, %v250
      %v261 = vpack.c.bf16 %v253, %v252
      %v262 = vld [vmem:[%s2] sm:$0xf]
      %vm263 = vcmask 64512
      %v265 = vsel %vm263, %v254, 0
      %v268 = vsel %vm263, %v255, 0
      %v271 = vsel %vm263, %v256, 0
      %v274 = vsel %vm263, %v257, 0
      %v277 = vsel %vm263, %v258, 0
      %v280 = vsel %vm263, %v259, 0
      %v283 = vsel %vm263, %v260, 0
      %v286 = vsel %vm263, %v261, 0
      %vm288 = vcmask 1043456
      %v290 = vsel %vm288, %v262, 0
      %292 = vmatpush.bf16.msra.mxu0 0
      %293 = vmatpush.bf16.msra.mxu0 0
      %294 = vmatpush.bf16.msra.mxu0 0
      %295 = vmatpush.bf16.msra.mxu0 0
      %296 = vmatpush.bf16.msra.mxu0 0
      %297 = vmatpush.bf16.msra.mxu0 0
      %298 = vmatpush.bf16.msra.mxu0 0
      %299 = vmatpush.bf16.msra.mxu0 %v290
      %300 = vmatmul.bf16.gmra.mxu0 %v265
      %v301 = vpop.f32.mrf.mxu0
      %v302 = vadd.f32 0.0, %v301
      %v303 = vpop.f32.mrf.mxu0
      %v304 = vadd.f32 0.0, %v303
      %305 = vmatmul.bf16.gmra.mxu0 %v268
      %v306 = vpop.f32.mrf.mxu0
      %v307 = vadd.f32 0.0, %v306
      %v308 = vpop.f32.mrf.mxu0
      %v309 = vadd.f32 0.0, %v308
      %310 = vmatmul.bf16.gmra.mxu0 %v271
      %v311 = vpop.f32.mrf.mxu0
      %v312 = vadd.f32 0.0, %v311
      %v313 = vpop.f32.mrf.mxu0
      %v314 = vadd.f32 0.0, %v313
      %315 = vmatmul.bf16.gmra.mxu0 %v274
      %v316 = vpop.f32.mrf.mxu0
      %v317 = vadd.f32 0.0, %v316
      %v318 = vpop.f32.mrf.mxu0
      %v319 = vadd.f32 0.0, %v318
      %320 = vmatmul.bf16.gmra.mxu0 %v277
      %v321 = vpop.f32.mrf.mxu0
      %v322 = vadd.f32 0.0, %v321
      %v323 = vpop.f32.mrf.mxu0
      %v324 = vadd.f32 0.0, %v323
      %325 = vmatmul.bf16.gmra.mxu0 %v280
      %v326 = vpop.f32.mrf.mxu0
      %v327 = vadd.f32 0.0, %v326
      %v328 = vpop.f32.mrf.mxu0
      %v329 = vadd.f32 0.0, %v328
      %330 = vmatmul.bf16.gmra.mxu0 %v283
      %v331 = vpop.f32.mrf.mxu0
      %v332 = vadd.f32 0.0, %v331
      %v333 = vpop.f32.mrf.mxu0
      %v334 = vadd.f32 0.0, %v333
      %335 = vmatmul.bf16.gmra.mxu0 %v286
      %v336 = vpop.f32.mrf.mxu0
      %v337 = vadd.f32 0.0, %v336
      %v338 = vpop.f32.mrf.mxu0
      %v339 = vadd.f32 0.0, %v338
      %340 = vdwg.mxu0
      %vm341 = vcmask 392192
      %342 = vst.msk [vmem:[%s199] sm:$0xff] %vm341, %v302
      %343 = vst.msk [vmem:[%s199 + $0x8] sm:$0xff] %vm341, %v304
      %344 = vst.msk [vmem:[%s199 + $0x10] sm:$0xff] %vm341, %v307
      %345 = vst.msk [vmem:[%s199 + $0x18] sm:$0xff] %vm341, %v309
      %346 = vst.msk [vmem:[%s199 + $0x20] sm:$0xff] %vm341, %v312
      %347 = vst.msk [vmem:[%s199 + $0x28] sm:$0xff] %vm341, %v314
      %348 = vst.msk [vmem:[%s199 + $0x30] sm:$0xff] %vm341, %v317
      %349 = vst.msk [vmem:[%s199 + $0x38] sm:$0xff] %vm341, %v319
      %350 = vst.msk [vmem:[%s199 + $0x40] sm:$0xff] %vm341, %v322
      %351 = vst.msk [vmem:[%s199 + $0x48] sm:$0xff] %vm341, %v324
      %352 = vst.msk [vmem:[%s199 + $0x50] sm:$0xff] %vm341, %v327
      %353 = vst.msk [vmem:[%s199 + $0x58] sm:$0xff] %vm341, %v329
      %354 = vst.msk [vmem:[%s199 + $0x60] sm:$0xff] %vm341, %v332
      %355 = vst.msk [vmem:[%s199 + $0x68] sm:$0xff] %vm341, %v334
      %356 = vst.msk [vmem:[%s199 + $0x70] sm:$0xff] %vm341, %v337
      %357 = vst.msk [vmem:[%s199 + $0x78] sm:$0xff] %vm341, %v339
      %s358 = smul.u32 16, %s15
      %p359 = scmp.lt.s32.totalorder %s358, 63
      %s360 = scalar_select %p359, %s358, 63
      %s361 = smul.addr %s360, 8
      %s362 = scalar_lea.vmem %s4, %s361
      // Predicated region
      $region37: #{histo_generator_forward.10} parent=35 // pred_check
        %p363 = pneg %p122
      $region38: #{histo_generator_forward.10} parent=35 // pred_check_branch
        %365 = sbr.rel (%p363) target = $region40
      $region39: #{histo_generator_forward.10} parent=35 // pred_region
        %s366 = smul.u32 16, %s15
      $region40: #{histo_generator_forward.10} parent=35 // pred_fallthru
        _
    $region36: #{histo_generator_forward.10} parent=5 // pred_fallthru
      _
    %p367 = scmp.le.s32.totalorder 2, %s10
    // Predicated region
    $region41: #{histo_generator_forward.10} parent=5 // pred_check
      %p368 = pneg %p367
    $region42: #{histo_generator_forward.10} parent=5 // pred_check_branch
      %370 = sbr.rel (%p368) target = $region44
    $region43: #{histo_generator_forward.10} parent=5 // pred_region
      %s371 = ssub.s32 %s10, 2
      // Predicated region
      $region45: #{histo_generator_forward.10} parent=43 // pred_check
        %p372 = pneg %p128
      $region46: #{histo_generator_forward.10} parent=43 // pred_check_branch
        %374 = sbr.rel (%p372) target = $region48
      $region47: #{histo_generator_forward.10} parent=43 // pred_region
        %s375 = smul.u32 16, %s16
        %p376 = scmp.lt.s32.totalorder %s375, 63
        %s377 = scalar_select %p376, %s375, 63
        %s378 = smul.addr %s377, 8
        %s379 = scalar_lea.vmem %s4, %s378
      $region48: #{histo_generator_forward.10} parent=43 // pred_fallthru
        _
    $region44: #{histo_generator_forward.10} parent=5 // pred_fallthru
      _
  $region6: #{histo_generator_forward.10} parent=0 // loop_footer
    %s14 = sadd.s32 1, %s10
  $region7: #{histo_generator_forward.10} parent=0 // loop_footer_branch
    %9 = sbr.rel target = $region3
  $region8: #{histo_generator_forward.10} parent=0 // loop_exit
    _

// kernel: tile.8
$region0: #{tile.8}
  #allocation0 [shape = 's32[1]{0}', space=sflag, size = 0x4, scoped, tag = 'scoped memory for tile.8']
  %s0 = inlined_call_operand.vmem [shape: f32[3], index: 0, kind: input, shape index: {}]
  %s1 = inlined_call_operand.vmem [shape: f32[256,3], index: 1, kind: output, shape index: {}]
  // Predicated region
  $region2: #{tile.8} parent=0 // pred_check
    _
  $region3: #{tile.8} parent=0 // pred_check_branch
    %3 = sbr.rel (0) target = $region5
  $region4: #{tile.8} parent=0 // pred_region
    _
  $region5: #{tile.8} parent=0 // pred_fallthru
    _
  %v4 = vld [vmem:[%s0] ss:$0 sm:$0xff]
  %5 = vst [vmem:[%s1] sm:$0xff] %v4
  %s6 = scalar_lea.vmem %s1, 8
  %7 = vst [vmem:[%s6] sm:$0xff] %v4
  %s8 = scalar_lea.vmem %s1, 16
  %9 = vst [vmem:[%s8] sm:$0xff] %v4
  %s10 = scalar_lea.vmem %s1, 24
  %11 = vst [vmem:[%s10] sm:$0xff] %v4
  %s12 = scalar_lea.vmem %s1, 32
  %13 = vst [vmem:[%s12] sm:$0xff] %v4
  %s14 = scalar_lea.vmem %s1, 40
  %15 = vst [vmem:[%s14] sm:$0xff] %v4
  %s16 = scalar_lea.vmem %s1, 48
  %17 = vst [vmem:[%s16] sm:$0xff] %v4
  %s18 = scalar_lea.vmem %s1, 56
  %19 = vst [vmem:[%s18] sm:$0xff] %v4
  %s20 = scalar_lea.vmem %s1, 64
  %21 = vst [vmem:[%s20] sm:$0xff] %v4
  %s22 = scalar_lea.vmem %s1, 72
  %23 = vst [vmem:[%s22] sm:$0xff] %v4
  %s24 = scalar_lea.vmem %s1, 80
  %25 = vst [vmem:[%s24] sm:$0xff] %v4
  %s26 = scalar_lea.vmem %s1, 88
  %27 = vst [vmem:[%s26] sm:$0xff] %v4
  %s28 = scalar_lea.vmem %s1, 96
  %29 = vst [vmem:[%s28] sm:$0xff] %v4
  %s30 = scalar_lea.vmem %s1, 104
  %31 = vst [vmem:[%s30] sm:$0xff] %v4
  %s32 = scalar_lea.vmem %s1, 112
  %33 = vst [vmem:[%s32] sm:$0xff] %v4
  %s34 = scalar_lea.vmem %s1, 120
  %35 = vst [vmem:[%s34] sm:$0xff] %v4
  %s36 = scalar_lea.vmem %s1, 128
  %37 = vst [vmem:[%s36] sm:$0xff] %v4
  %s38 = scalar_lea.vmem %s1, 136
  %39 = vst [vmem:[%s38] sm:$0xff] %v4
  %s40 = scalar_lea.vmem %s1, 144
  %41 = vst [vmem:[%s40] sm:$0xff] %v4
  %s42 = scalar_lea.vmem %s1, 152
  %43 = vst [vmem:[%s42] sm:$0xff] %v4
  %s44 = scalar_lea.vmem %s1, 160
  %45 = vst [vmem:[%s44] sm:$0xff] %v4
  %s46 = scalar_lea.vmem %s1, 168
  %47 = vst [vmem:[%s46] sm:$0xff] %v4
  %s48 = scalar_lea.vmem %s1, 176
  %49 = vst [vmem:[%s48] sm:$0xff] %v4
  %s50 = scalar_lea.vmem %s1, 184
  %51 = vst [vmem:[%s50] sm:$0xff] %v4
  %s52 = scalar_lea.vmem %s1, 192
  %53 = vst [vmem:[%s52] sm:$0xff] %v4
  %s54 = scalar_lea.vmem %s1, 200
  %55 = vst [vmem:[%s54] sm:$0xff] %v4
  %s56 = scalar_lea.vmem %s1, 208
  %57 = vst [vmem:[%s56] sm:$0xff] %v4
  %s58 = scalar_lea.vmem %s1, 216
  %59 = vst [vmem:[%s58] sm:$0xff] %v4
  %s60 = scalar_lea.vmem %s1, 224
  %61 = vst [vmem:[%s60] sm:$0xff] %v4
  %s62 = scalar_lea.vmem %s1, 232
  %63 = vst [vmem:[%s62] sm:$0xff] %v4
  %s64 = scalar_lea.vmem %s1, 240
  %65 = vst [vmem:[%s64] sm:$0xff] %v4
  %s66 = scalar_lea.vmem %s1, 248
  %67 = vst [vmem:[%s66] sm:$0xff] %v4

// kernel: tile.9
$region0: #{tile.9}
  %s0 = inlined_call_operand.vmem [shape: f32[256,3], index: 0, kind: input, shape index: {}]
  %s1 = inlined_call_operand.vmem [shape: f32[1,768], index: 1, kind: output, shape index: {}]
  $region1: #{tile.9} parent=0
    #allocation0 [shape = 'u8[24576]{0}', space=vmem, size = 0x6000, scoped, tag = 'scoped mem for output reshape']
    %v2 = vld [vmem:[%s0] sm:$0x1]
    %s3 = scalar_lea.vmem %s0, 127
    %v4 = vld [vmem:[%s3] sm:$0x2]
    %vm5 = vcmask 1041409
    %v6 = vsel %vm5, %v4, %v2
    %vm7 = vcmask 23552
    %8 = vst.msk [vmem:[#allocation0] ss:$24 sm:$0x3] %vm7, %v6
    %s9 = scalar_lea.vmem %s0, 213
    %v10 = vld [vmem:[%s9] sm:$0x1]
    %s11 = scalar_lea.vmem %s0, 84
    %v12 = vld [vmem:[%s11] sm:$0x2]
    %vm13 = vcmask 1041409
    %v14 = vsel %vm13, %v12, %v10
    %s15 = scalar_lea.vmem %s0, 213
    %v16 = vld [vmem:[%s15] sm:$0x1]
    %s17 = scalar_lea.vmem %s0, 84
    %v18 = vld [vmem:[%s17] sm:$0x2]
    %vm19 = vcmask 1041409
    %v20 = vsel %vm19, %v18, %v16
    %vm21 = vcmask 7168
    %v22 = vsel %vm21, %v20, %v14
    %23 = vrot.lane.b32.xlu0 %v22, 127
    %v24 = vpop.permute.xlu0 %23
    %vm25 = vcmask 15360
    %s26 = scalar_lea.vmem [#allocation0], 40
    %27 = vst.msk [vmem:[%s26] ss:$-24 sm:$0x3] %vm25, %v24
    %vm28 = vcmask 1048568
    %s29 = scalar_lea.vmem [#allocation0], 32
    %30 = vst.msk [vmem:[%s29] ss:$-24 sm:$0x3] %vm28, %v24
    %s31 = scalar_lea.vmem %s0, 170
    %v32 = vld [vmem:[%s31] sm:$0x1]
    %s33 = scalar_lea.vmem %s0, 41
    %v34 = vld [vmem:[%s33] sm:$0x2]
    %vm35 = vcmask 1041409
    %v36 = vsel %vm35, %v34, %v32
    %s37 = scalar_lea.vmem %s0, 42
    %v38 = vld [vmem:[%s37] sm:$0x1]
    %s39 = scalar_lea.vmem %s0, 169
    %v40 = vld [vmem:[%s39] sm:$0x2]
    %vm41 = vcmask 1041409
    %v42 = vsel %vm41, %v40, %v38
    %vm43 = vcmask 15360
    %v44 = vsel %vm43, %v42, %v36
    %45 = vrot.lane.b32.xlu0 %v44, 126
    %v46 = vpop.permute.xlu0 %45
    %vm47 = vcmask 7168
    %s48 = scalar_lea.vmem [#allocation0], 32
    %49 = vst.msk [vmem:[%s48] ss:$-24 sm:$0x3] %vm47, %v46
    %vm50 = vcmask 1048560
    %51 = vst.msk [vmem:[#allocation0] ss:$24 sm:$0x3] %vm50, %v46
    %s52 = scalar_lea.vmem %s0, 255
    %v53 = vld [vmem:[%s52] sm:$0x1]
    %s54 = scalar_lea.vmem %s0, 126
    %v55 = vld [vmem:[%s54] sm:$0x2]
    %vm56 = vcmask 1041409
    %v57 = vsel %vm56, %v55, %v53
    %58 = vrot.lane.b32.xlu0 %v57, 125
    %v59 = vpop.permute.xlu0 %58
    %vm60 = vcmask 1048552
    %s61 = scalar_lea.vmem [#allocation0], 40
    %62 = vst.msk [vmem:[%s61] ss:$-24 sm:$0x3] %vm60, %v59
    %s63 = scalar_lea.vmem %s0, 212
    %v64 = vld [vmem:[%s63] sm:$0x1]
    %s65 = scalar_lea.vmem %s0, 83
    %v66 = vld [vmem:[%s65] sm:$0x2]
    %vm67 = vcmask 1041409
    %v68 = vsel %vm67, %v66, %v64
    %69 = vrot.lane.b32.xlu0 %v68, 124
    %v70 = vpop.permute.xlu0 %69
    %vm71 = vcmask 1040352
    %s72 = scalar_lea.vmem [#allocation0], 32
    %73 = vst.msk [vmem:[%s72] ss:$-24 sm:$0x3] %vm71, %v70
    %s74 = scalar_lea.vmem %s0, 41
    %v75 = vld [vmem:[%s74] sm:$0x1]
    %s76 = scalar_lea.vmem %s0, 168
    %v77 = vld [vmem:[%s76] sm:$0x2]
    %vm78 = vcmask 1041409
    %v79 = vsel %vm78, %v77, %v75
    %80 = vrot.lane.b32.xlu0 %v79, 123
    %v81 = vpop.permute.xlu0 %80
    %vm82 = vcmask 1032152
    %83 = vst.msk [vmem:[#allocation0] ss:$24 sm:$0x3] %vm82, %v81
    %s84 = scalar_lea.vmem %s0, 254
    %v85 = vld [vmem:[%s84] sm:$0x1]
    %s86 = scalar_lea.vmem %s0, 125
    %v87 = vld [vmem:[%s86] sm:$0x2]
    %vm88 = vcmask 1041409
    %v89 = vsel %vm88, %v87, %v85
    %90 = vrot.lane.b32.xlu0 %v89, 122
    %v91 = vpop.permute.xlu0 %90
    %vm92 = vcmask 1023952
    %s93 = scalar_lea.vmem [#allocation0], 40
    %94 = vst.msk [vmem:[%s93] ss:$-24 sm:$0x3] %vm92, %v91
    %s95 = scalar_lea.vmem %s0, 211
    %v96 = vld [vmem:[%s95] sm:$0x1]
    %s97 = scalar_lea.vmem %s0, 82
    %v98 = vld [vmem:[%s97] sm:$0x2]
    %vm99 = vcmask 1041409
    %v100 = vsel %vm99, %v98, %v96
    %101 = vrot.lane.b32.xlu0 %v100, 121
    %v102 = vpop.permute.xlu0 %101
    %vm103 = vcmask 1015752
    %s104 = scalar_lea.vmem [#allocation0], 32
    %105 = vst.msk [vmem:[%s104] ss:$-24 sm:$0x3] %vm103, %v102
    %s106 = scalar_lea.vmem %s0, 40
    %v107 = vld [vmem:[%s106] sm:$0x1]
    %s108 = scalar_lea.vmem %s0, 167
    %v109 = vld [vmem:[%s108] sm:$0x2]
    %vm110 = vcmask 1041409
    %v111 = vsel %vm110, %v109, %v107
    %112 = vrot.lane.b32.xlu0 %v111, 120
    %v113 = vpop.permute.xlu0 %112
    %vm114 = vcmask 1007552
    %115 = vst.msk [vmem:[#allocation0] ss:$24 sm:$0x3] %vm114, %v113
    %s116 = scalar_lea.vmem %s0, 253
    %v117 = vld [vmem:[%s116] sm:$0x1]
    %s118 = scalar_lea.vmem %s0, 124
    %v119 = vld [vmem:[%s118] sm:$0x2]
    %vm120 = vcmask 1041409
    %v121 = vsel %vm120, %v119, %v117
    %122 = vrot.lane.b32.xlu0 %v121, 119
    %v123 = vpop.permute.xlu0 %122
    %vm124 = vcmask 999352
    %s125 = scalar_lea.vmem [#allocation0], 40
    %126 = vst.msk [vmem:[%s125] ss:$-24 sm:$0x3] %vm124, %v123
    %s127 = scalar_lea.vmem %s0, 210
    %v128 = vld [vmem:[%s127] sm:$0x1]
    %s129 = scalar_lea.vmem %s0, 81
    %v130 = vld [vmem:[%s129] sm:$0x2]
    %vm131 = vcmask 1041409
    %v132 = vsel %vm131, %v130, %v128
    %133 = vrot.lane.b32.xlu0 %v132, 118
    %v134 = vpop.permute.xlu0 %133
    %vm135 = vcmask 991152
    %s136 = scalar_lea.vmem [#allocation0], 32
    %137 = vst.msk [vmem:[%s136] ss:$-24 sm:$0x3] %vm135, %v134
    %s138 = scalar_lea.vmem %s0, 39
    %v139 = vld [vmem:[%s138] sm:$0x1]
    %s140 = scalar_lea.vmem %s0, 166
    %v141 = vld [vmem:[%s140] sm:$0x2]
    %vm142 = vcmask 1041409
    %v143 = vsel %vm142, %v141, %v139
    %144 = vrot.lane.b32.xlu0 %v143, 117
    %v145 = vpop.permute.xlu0 %144
    %vm146 = vcmask 982952
    %147 = vst.msk [vmem:[#allocation0] ss:$24 sm:$0x3] %vm146, %v145
    %s148 = scalar_lea.vmem %s0, 252
    %v149 = vld [vmem:[%s148] sm:$0x1]
    %s150 = scalar_lea.vmem %s0, 123
    %v151 = vld [vmem:[%s150] sm:$0x2]
    %vm152 = vcmask 1041409
    %v153 = vsel %vm152, %v151, %v149
    %154 = vrot.lane.b32.xlu0 %v153, 116
    %v155 = vpop.permute.xlu0 %154
    %vm156 = vcmask 974752
    %s157 = scalar_lea.vmem [#allocation0], 40
    %158 = vst.msk [vmem:[%s157] ss:$-24 sm:$0x3] %vm156, %v155
    %s159 = scalar_lea.vmem %s0, 209
    %v160 = vld [vmem:[%s159] sm:$0x1]
    %s161 = scalar_lea.vmem %s0, 80
    %v162 = vld [vmem:[%s161] sm:$0x2]
    %vm163 = vcmask 1041409
    %v164 = vsel %vm163, %v162, %v160
    %165 = vrot.lane.b32.xlu0 %v164, 115
    %v166 = vpop.permute.xlu0 %165
    %vm167 = vcmask 966552
    %s168 = scalar_lea.vmem [#allocation0], 32
    %169 = vst.msk [vmem:[%s168] ss:$-24 sm:$0x3] %vm167, %v166
    %s170 = scalar_lea.vmem %s0, 38
    %v171 = vld [vmem:[%s170] sm:$0x1]
    %s172 = scalar_lea.vmem %s0, 165
    %v173 = vld [vmem:[%s172] sm:$0x2]
    %vm174 = vcmask 1041409
    %v175 = vsel %vm174, %v173, %v171
    %176 = vrot.lane.b32.xlu0 %v175, 114
    %v177 = vpop.permute.xlu0 %176
    %vm178 = vcmask 958352
    %179 = vst.msk [vmem:[#allocation0] ss:$24 sm:$0x3] %vm178, %v177
    %s180 = scalar_lea.vmem %s0, 251
    %v181 = vld [vmem:[%s180] sm:$0x1]
    %s182 = scalar_lea.vmem %s0, 122
    %v183 = vld [vmem:[%s182] sm:$0x2]
    %vm184 = vcmask 1041409
    %v185 = vsel %vm184, %v183, %v181
    %186 = vrot.lane.b32.xlu0 %v185, 113
    %v187 = vpop.permute.xlu0 %186
    %vm188 = vcmask 950152
    %s189 = scalar_lea.vmem [#allocation0], 40
    %190 = vst.msk [vmem:[%s189] ss:$-24 sm:$0x3] %vm188, %v187
    %s191 = scalar_lea.vmem %s0, 208
    %v192 = vld [vmem:[%s191] sm:$0x1]
    %s193 = scalar_lea.vmem %s0, 79
    %v194 = vld [vmem:[%s193] sm:$0x2]
    %vm195 = vcmask 1041409
    %v196 = vsel %vm195, %v194, %v192
    %197 = vrot.lane.b32.xlu0 %v196, 112
    %v198 = vpop.permute.xlu0 %197
    %vm199 = vcmask 941952
    %s200 = scalar_lea.vmem [#allocation0], 32
    %201 = vst.msk [vmem:[%s200] ss:$-24 sm:$0x3] %vm199, %v198
    %s202 = scalar_lea.vmem %s0, 37
    %v203 = vld [vmem:[%s202] sm:$0x1]
    %s204 = scalar_lea.vmem %s0, 164
    %v205 = vld [vmem:[%s204] sm:$0x2]
    %vm206 = vcmask 1041409
    %v207 = vsel %vm206, %v205, %v203
    %208 = vrot.lane.b32.xlu0 %v207, 111
    %v209 = vpop.permute.xlu0 %208
    %vm210 = vcmask 933752
    %211 = vst.msk [vmem:[#allocation0] ss:$24 sm:$0x3] %vm210, %v209
    %s212 = scalar_lea.vmem %s0, 250
    %v213 = vld [vmem:[%s212] sm:$0x1]
    %s214 = scalar_lea.vmem %s0, 121
    %v215 = vld [vmem:[%s214] sm:$0x2]
    %vm216 = vcmask 1041409
    %v217 = vsel %vm216, %v215, %v213
    %218 = vrot.lane.b32.xlu0 %v217, 110
    %v219 = vpop.permute.xlu0 %218
    %vm220 = vcmask 925552
    %s221 = scalar_lea.vmem [#allocation0], 40
    %222 = vst.msk [vmem:[%s221] ss:$-24 sm:$0x3] %vm220, %v219
    %s223 = scalar_lea.vmem %s0, 207
    %v224 = vld [vmem:[%s223] sm:$0x1]
    %s225 = scalar_lea.vmem %s0, 78
    %v226 = vld [vmem:[%s225] sm:$0x2]
    %vm227 = vcmask 1041409
    %v228 = vsel %vm227, %v226, %v224
    %229 = vrot.lane.b32.xlu0 %v228, 109
    %v230 = vpop.permute.xlu0 %229
    %vm231 = vcmask 917352
    %s232 = scalar_lea.vmem [#allocation0], 32
    %233 = vst.msk [vmem:[%s232] ss:$-24 sm:$0x3] %vm231, %v230
    %s234 = scalar_lea.vmem %s0, 36
    %v235 = vld [vmem:[%s234] sm:$0x1]
    %s236 = scalar_lea.vmem %s0, 163
    %v237 = vld [vmem:[%s236] sm:$0x2]
    %vm238 = vcmask 1041409
    %v239 = vsel %vm238, %v237, %v235
    %240 = vrot.lane.b32.xlu0 %v239, 108
    %v241 = vpop.permute.xlu0 %240
    %vm242 = vcmask 909152
    %243 = vst.msk [vmem:[#allocation0] ss:$24 sm:$0x3] %vm242, %v241
    %s244 = scalar_lea.vmem %s0, 249
    %v245 = vld [vmem:[%s244] sm:$0x1]
    %s246 = scalar_lea.vmem %s0, 120
    %v247 = vld [vmem:[%s246] sm:$0x2]
    %vm248 = vcmask 1041409
    %v249 = vsel %vm248, %v247, %v245
    %250 = vrot.lane.b32.xlu0 %v249, 107
    %v251 = vpop.permute.xlu0 %250
    %vm252 = vcmask 900952
    %s253 = scalar_lea.vmem [#allocation0], 40
    %254 = vst.msk [vmem:[%s253] ss:$-24 sm:$0x3] %vm252, %v251
    %s255 = scalar_lea.vmem %s0, 206
    %v256 = vld [vmem:[%s255] sm:$0x1]
    %s257 = scalar_lea.vmem %s0, 77
    %v258 = vld [vmem:[%s257] sm:$0x2]
    %vm259 = vcmask 1041409
    %v260 = vsel %vm259, %v258, %v256
    %261 = vrot.lane.b32.xlu0 %v260, 106
    %v262 = vpop.permute.xlu0 %261
    %vm263 = vcmask 892752
    %s264 = scalar_lea.vmem [#allocation0], 32
    %265 = vst.msk [vmem:[%s264] ss:$-24 sm:$0x3] %vm263, %v262
    %s266 = scalar_lea.vmem %s0, 35
    %v267 = vld [vmem:[%s266] sm:$0x1]
    %s268 = scalar_lea.vmem %s0, 162
    %v269 = vld [vmem:[%s268] sm:$0x2]
    %vm270 = vcmask 1041409
    %v271 = vsel %vm270, %v269, %v267
    %272 = vrot.lane.b32.xlu0 %v271, 105
    %v273 = vpop.permute.xlu0 %272
    %vm274 = vcmask 884552
    %275 = vst.msk [vmem:[#allocation0] ss:$24 sm:$0x3] %vm274, %v273
    %s276 = scalar_lea.vmem %s0, 248
    %v277 = vld [vmem:[%s276] sm:$0x1]
    %s278 = scalar_lea.vmem %s0, 119
    %v279 = vld [vmem:[%s278] sm:$0x2]
    %vm280 = vcmask 1041409
    %v281 = vsel %vm280, %v279, %v277
    %282 = vrot.lane.b32.xlu0 %v281, 104
    %v283 = vpop.permute.xlu0 %282
    %vm284 = vcmask 876352
    %s285 = scalar_lea.vmem [#allocation0], 40
    %286 = vst.msk [vmem:[%s285] ss:$-24 sm:$0x3] %vm284, %v283
    %s287 = scalar_lea.vmem %s0, 205
    %v288 = vld [vmem:[%s287] sm:$0x1]
    %s289 = scalar_lea.vmem %s0, 76
    %v290 = vld [vmem:[%s289] sm:$0x2]
    %vm291 = vcmask 1041409
    %v292 = vsel %vm291, %v290, %v288
    %293 = vrot.lane.b32.xlu0 %v292, 103
    %v294 = vpop.permute.xlu0 %293
    %vm295 = vcmask 868152
    %s296 = scalar_lea.vmem [#allocation0], 32
    %297 = vst.msk [vmem:[%s296] ss:$-24 sm:$0x3] %vm295, %v294
    %s298 = scalar_lea.vmem %s0, 34
    %v299 = vld [vmem:[%s298] sm:$0x1]
    %s300 = scalar_lea.vmem %s0, 161
    %v301 = vld [vmem:[%s300] sm:$0x2]
    %vm302 = vcmask 1041409
    %v303 = vsel %vm302, %v301, %v299
    %304 = vrot.lane.b32.xlu0 %v303, 102
    %v305 = vpop.permute.xlu0 %304
    %vm306 = vcmask 859952
    %307 = vst.msk [vmem:[#allocation0] ss:$24 sm:$0x3] %vm306, %v305
    %s308 = scalar_lea.vmem %s0, 247
    %v309 = vld [vmem:[%s308] sm:$0x1]
    %s310 = scalar_lea.vmem %s0, 118
    %v311 = vld [vmem:[%s310] sm:$0x2]
    %vm312 = vcmask 1041409
    %v313 = vsel %vm312, %v311, %v309
    %314 = vrot.lane.b32.xlu0 %v313, 101
    %v315 = vpop.permute.xlu0 %314
    %vm316 = vcmask 851752
    %s317 = scalar_lea.vmem [#allocation0], 40
    %318 = vst.msk [vmem:[%s317] ss:$-24 sm:$0x3] %vm316, %v315
    %s319 = scalar_lea.vmem %s0, 204
    %v320 = vld [vmem:[%s319] sm:$0x1]
    %s321 = scalar_lea.vmem %s0, 75
    %v322 = vld [vmem:[%s321] sm:$0x2]
    %vm323 = vcmask 1041409
    %v324 = vsel %vm323, %v322, %v320
    %325 = vrot.lane.b32.xlu0 %v324, 100
    %v326 = vpop.permute.xlu0 %325
    %vm327 = vcmask 843552
    %s328 = scalar_lea.vmem [#allocation0], 32
    %329 = vst.msk [vmem:[%s328] ss:$-24 sm:$0x3] %vm327, %v326
    %s330 = scalar_lea.vmem %s0, 33
    %v331 = vld [vmem:[%s330] sm:$0x1]
    %s332 = scalar_lea.vmem %s0, 160
    %v333 = vld [vmem:[%s332] sm:$0x2]
    %vm334 = vcmask 1041409
    %v335 = vsel %vm334, %v333, %v331
    %336 = vrot.lane.b32.xlu0 %v335, 99
    %v337 = vpop.permute.xlu0 %336
    %vm338 = vcmask 835352
    %339 = vst.msk [vmem:[#allocation0] ss:$24 sm:$0x3] %vm338, %v337
    %s340 = scalar_lea.vmem %s0, 246
    %v341 = vld [vmem:[%s340] sm:$0x1]
    %s342 = scalar_lea.vmem %s0, 117
    %v343 = vld [vmem:[%s342] sm:$0x2]
    %vm344 = vcmask 1041409
    %v345 = vsel %vm344, %v343, %v341
    %346 = vrot.lane.b32.xlu0 %v345, 98
    %v347 = vpop.permute.xlu0 %346
    %vm348 = vcmask 827152
    %s349 = scalar_lea.vmem [#allocation0], 40
    %350 = vst.msk [vmem:[%s349] ss:$-24 sm:$0x3] %vm348, %v347
    %s351 = scalar_lea.vmem %s0, 203
    %v352 = vld [vmem:[%s351] sm:$0x1]
    %s353 = scalar_lea.vmem %s0, 74
    %v354 = vld [vmem:[%s353] sm:$0x2]
    %vm355 = vcmask 1041409
    %v356 = vsel %vm355, %v354, %v352
    %357 = vrot.lane.b32.xlu0 %v356, 97
    %v358 = vpop.permute.xlu0 %357
    %vm359 = vcmask 818952
    %s360 = scalar_lea.vmem [#allocation0], 32
    %361 = vst.msk [vmem:[%s360] ss:$-24 sm:$0x3] %vm359, %v358
    %s362 = scalar_lea.vmem %s0, 32
    %v363 = vld [vmem:[%s362] sm:$0x1]
    %s364 = scalar_lea.vmem %s0, 159
    %v365 = vld [vmem:[%s364] sm:$0x2]
    %vm366 = vcmask 1041409
    %v367 = vsel %vm366, %v365, %v363
    %368 = vrot.lane.b32.xlu0 %v367, 96
    %v369 = vpop.permute.xlu0 %368
    %vm370 = vcmask 810752
    %371 = vst.msk [vmem:[#allocation0] ss:$24 sm:$0x3] %vm370, %v369
    %s372 = scalar_lea.vmem %s0, 245
    %v373 = vld [vmem:[%s372] sm:$0x1]
    %s374 = scalar_lea.vmem %s0, 116
    %v375 = vld [vmem:[%s374] sm:$0x2]
    %vm376 = vcmask 1041409
    %v377 = vsel %vm376, %v375, %v373
    %378 = vrot.lane.b32.xlu0 %v377, 95
    %v379 = vpop.permute.xlu0 %378
    %vm380 = vcmask 802552
    %s381 = scalar_lea.vmem [#allocation0], 40
    %382 = vst.msk [vmem:[%s381] ss:$-24 sm:$0x3] %vm380, %v379
    %s383 = scalar_lea.vmem %s0, 202
    %v384 = vld [vmem:[%s383] sm:$0x1]
    %s385 = scalar_lea.vmem %s0, 73
    %v386 = vld [vmem:[%s385] sm:$0x2]
    %vm387 = vcmask 1041409
    %v388 = vsel %vm387, %v386, %v384
    %389 = vrot.lane.b32.xlu0 %v388, 94
    %v390 = vpop.permute.xlu0 %389
    %vm391 = vcmask 794352
    %s392 = scalar_lea.vmem [#allocation0], 32
    %393 = vst.msk [vmem:[%s392] ss:$-24 sm:$0x3] %vm391, %v390
    %s394 = scalar_lea.vmem %s0, 31
    %v395 = vld [vmem:[%s394] sm:$0x1]
    %s396 = scalar_lea.vmem %s0, 158
    %v397 = vld [vmem:[%s396] sm:$0x2]
    %vm398 = vcmask 1041409
    %v399 = vsel %vm398, %v397, %v395
    %400 = vrot.lane.b32.xlu0 %v399, 93
    %v401 = vpop.permute.xlu0 %400
    %vm402 = vcmask 786152
    %403 = vst.msk [vmem:[#allocation0] ss:$24 sm:$0x3] %vm402, %v401
    %s404 = scalar_lea.vmem %s0, 244
    %v405 = vld [vmem:[%s404] sm:$0x1]
    %s406 = scalar_lea.vmem %s0, 115
    %v407 = vld [vmem:[%s406] sm:$0x2]
    %vm408 = vcmask 1041409
    %v409 = vsel %vm408, %v407, %v405
    %410 = vrot.lane.b32.xlu0 %v409, 92
    %v411 = vpop.permute.xlu0 %410
    %vm412 = vcmask 777952
    %s413 = scalar_lea.vmem [#allocation0], 40
    %414 = vst.msk [vmem:[%s413] ss:$-24 sm:$0x3] %vm412, %v411
    %s415 = scalar_lea.vmem %s0, 201
    %v416 = vld [vmem:[%s415] sm:$0x1]
    %s417 = scalar_lea.vmem %s0, 72
    %v418 = vld [vmem:[%s417] sm:$0x2]
    %vm419 = vcmask 1041409
    %v420 = vsel %vm419, %v418, %v416
    %421 = vrot.lane.b32.xlu0 %v420, 91
    %v422 = vpop.permute.xlu0 %421
    %vm423 = vcmask 769752
    %s424 = scalar_lea.vmem [#allocation0], 32
    %425 = vst.msk [vmem:[%s424] ss:$-24 sm:$0x3] %vm423, %v422
    %s426 = scalar_lea.vmem %s0, 30
    %v427 = vld [vmem:[%s426] sm:$0x1]
    %s428 = scalar_lea.vmem %s0, 157
    %v429 = vld [vmem:[%s428] sm:$0x2]
    %vm430 = vcmask 1041409
    %v431 = vsel %vm430, %v429, %v427
    %432 = vrot.lane.b32.xlu0 %v431, 90
    %v433 = vpop.permute.xlu0 %432
    %vm434 = vcmask 761552
    %435 = vst.msk [vmem:[#allocation0] ss:$24 sm:$0x3] %vm434, %v433
    %s436 = scalar_lea.vmem %s0, 243
    %v437 = vld [vmem:[%s436] sm:$0x1]
    %s438 = scalar_lea.vmem %s0, 114
    %v439 = vld [vmem:[%s438] sm:$0x2]
    %vm440 = vcmask 1041409
    %v441 = vsel %vm440, %v439, %v437
    %442 = vrot.lane.b32.xlu0 %v441, 89
    %v443 = vpop.permute.xlu0 %442
    %vm444 = vcmask 753352
    %s445 = scalar_lea.vmem [#allocation0], 40
    %446 = vst.msk [vmem:[%s445] ss:$-24 sm:$0x3] %vm444, %v443
    %s447 = scalar_lea.vmem %s0, 200
    %v448 = vld [vmem:[%s447] sm:$0x1]
    %s449 = scalar_lea.vmem %s0, 71
    %v450 = vld [vmem:[%s449] sm:$0x2]
    %vm451 = vcmask 1041409
    %v452 = vsel %vm451, %v450, %v448
    %453 = vrot.lane.b32.xlu0 %v452, 88
    %v454 = vpop.permute.xlu0 %453
    %vm455 = vcmask 745152
    %s456 = scalar_lea.vmem [#allocation0], 32
    %457 = vst.msk [vmem:[%s456] ss:$-24 sm:$0x3] %vm455, %v454
    %s458 = scalar_lea.vmem %s0, 29
    %v459 = vld [vmem:[%s458] sm:$0x1]
    %s460 = scalar_lea.vmem %s0, 156
    %v461 = vld [vmem:[%s460] sm:$0x2]
    %vm462 = vcmask 1041409
    %v463 = vsel %vm462, %v461, %v459
    %464 = vrot.lane.b32.xlu0 %v463, 87
    %v465 = vpop.permute.xlu0 %464
    %vm466 = vcmask 736952
    %467 = vst.msk [vmem:[#allocation0] ss:$24 sm:$0x3] %vm466, %v465
    %s468 = scalar_lea.vmem %s0, 242
    %v469 = vld [vmem:[%s468] sm:$0x1]
    %s470 = scalar_lea.vmem %s0, 113
    %v471 = vld [vmem:[%s470] sm:$0x2]
    %vm472 = vcmask 1041409
    %v473 = vsel %vm472, %v471, %v469
    %474 = vrot.lane.b32.xlu0 %v473, 86
    %v475 = vpop.permute.xlu0 %474
    %vm476 = vcmask 728752
    %s477 = scalar_lea.vmem [#allocation0], 40
    %478 = vst.msk [vmem:[%s477] ss:$-24 sm:$0x3] %vm476, %v475
    %s479 = scalar_lea.vmem %s0, 199
    %v480 = vld [vmem:[%s479] sm:$0x1]
    %s481 = scalar_lea.vmem %s0, 70
    %v482 = vld [vmem:[%s481] sm:$0x2]
    %vm483 = vcmask 1041409
    %v484 = vsel %vm483, %v482, %v480
    %485 = vrot.lane.b32.xlu0 %v484, 85
    %v486 = vpop.permute.xlu0 %485
    %vm487 = vcmask 720552
    %s488 = scalar_lea.vmem [#allocation0], 32
    %489 = vst.msk [vmem:[%s488] ss:$-24 sm:$0x3] %vm487, %v486
    %s490 = scalar_lea.vmem %s0, 28
    %v491 = vld [vmem:[%s490] sm:$0x1]
    %s492 = scalar_lea.vmem %s0, 155
    %v493 = vld [vmem:[%s492] sm:$0x2]
    %vm494 = vcmask 1041409
    %v495 = vsel %vm494, %v493, %v491
    %496 = vrot.lane.b32.xlu0 %v495, 84
    %v497 = vpop.permute.xlu0 %496
    %vm498 = vcmask 712352
    %499 = vst.msk [vmem:[#allocation0] ss:$24 sm:$0x3] %vm498, %v497
    %s500 = scalar_lea.vmem %s0, 241
    %v501 = vld [vmem:[%s500] sm:$0x1]
    %s502 = scalar_lea.vmem %s0, 112
    %v503 = vld [vmem:[%s502] sm:$0x2]
    %vm504 = vcmask 1041409
    %v505 = vsel %vm504, %v503, %v501
    %506 = vrot.lane.b32.xlu0 %v505, 83
    %v507 = vpop.permute.xlu0 %506
    %vm508 = vcmask 704152
    %s509 = scalar_lea.vmem [#allocation0], 40
    %510 = vst.msk [vmem:[%s509] ss:$-24 sm:$0x3] %vm508, %v507
    %s511 = scalar_lea.vmem %s0, 198
    %v512 = vld [vmem:[%s511] sm:$0x1]
    %s513 = scalar_lea.vmem %s0, 69
    %v514 = vld [vmem:[%s513] sm:$0x2]
    %vm515 = vcmask 1041409
    %v516 = vsel %vm515, %v514, %v512
    %517 = vrot.lane.b32.xlu0 %v516, 82
    %v518 = vpop.permute.xlu0 %517
    %vm519 = vcmask 695952
    %s520 = scalar_lea.vmem [#allocation0], 32
    %521 = vst.msk [vmem:[%s520] ss:$-24 sm:$0x3] %vm519, %v518
    %s522 = scalar_lea.vmem %s0, 27
    %v523 = vld [vmem:[%s522] sm:$0x1]
    %s524 = scalar_lea.vmem %s0, 154
    %v525 = vld [vmem:[%s524] sm:$0x2]
    %vm526 = vcmask 1041409
    %v527 = vsel %vm526, %v525, %v523
    %528 = vrot.lane.b32.xlu0 %v527, 81
    %v529 = vpop.permute.xlu0 %528
    %vm530 = vcmask 687752
    %531 = vst.msk [vmem:[#allocation0] ss:$24 sm:$0x3] %vm530, %v529
    %s532 = scalar_lea.vmem %s0, 240
    %v533 = vld [vmem:[%s532] sm:$0x1]
    %s534 = scalar_lea.vmem %s0, 111
    %v535 = vld [vmem:[%s534] sm:$0x2]
    %vm536 = vcmask 1041409
    %v537 = vsel %vm536, %v535, %v533
    %538 = vrot.lane.b32.xlu0 %v537, 80
    %v539 = vpop.permute.xlu0 %538
    %vm540 = vcmask 679552
    %s541 = scalar_lea.vmem [#allocation0], 40
    %542 = vst.msk [vmem:[%s541] ss:$-24 sm:$0x3] %vm540, %v539
    %s543 = scalar_lea.vmem %s0, 197
    %v544 = vld [vmem:[%s543] sm:$0x1]
    %s545 = scalar_lea.vmem %s0, 68
    %v546 = vld [vmem:[%s545] sm:$0x2]
    %vm547 = vcmask 1041409
    %v548 = vsel %vm547, %v546, %v544
    %549 = vrot.lane.b32.xlu0 %v548, 79
    %v550 = vpop.permute.xlu0 %549
    %vm551 = vcmask 671352
    %s552 = scalar_lea.vmem [#allocation0], 32
    %553 = vst.msk [vmem:[%s552] ss:$-24 sm:$0x3] %vm551, %v550
    %s554 = scalar_lea.vmem %s0, 26
    %v555 = vld [vmem:[%s554] sm:$0x1]
    %s556 = scalar_lea.vmem %s0, 153
    %v557 = vld [vmem:[%s556] sm:$0x2]
    %vm558 = vcmask 1041409
    %v559 = vsel %vm558, %v557, %v555
    %560 = vrot.lane.b32.xlu0 %v559, 78
    %v561 = vpop.permute.xlu0 %560
    %vm562 = vcmask 663152
    %563 = vst.msk [vmem:[#allocation0] ss:$24 sm:$0x3] %vm562, %v561
    %s564 = scalar_lea.vmem %s0, 239
    %v565 = vld [vmem:[%s564] sm:$0x1]
    %s566 = scalar_lea.vmem %s0, 110
    %v567 = vld [vmem:[%s566] sm:$0x2]
    %vm568 = vcmask 1041409
    %v569 = vsel %vm568, %v567, %v565
    %570 = vrot.lane.b32.xlu0 %v569, 77
    %v571 = vpop.permute.xlu0 %570
    %vm572 = vcmask 654952
    %s573 = scalar_lea.vmem [#allocation0], 40
    %574 = vst.msk [vmem:[%s573] ss:$-24 sm:$0x3] %vm572, %v571
    %s575 = scalar_lea.vmem %s0, 196
    %v576 = vld [vmem:[%s575] sm:$0x1]
    %s577 = scalar_lea.vmem %s0, 67
    %v578 = vld [vmem:[%s577] sm:$0x2]
    %vm579 = vcmask 1041409
    %v580 = vsel %vm579, %v578, %v576
    %581 = vrot.lane.b32.xlu0 %v580, 76
    %v582 = vpop.permute.xlu0 %581
    %vm583 = vcmask 646752
    %s584 = scalar_lea.vmem [#allocation0], 32
    %585 = vst.msk [vmem:[%s584] ss:$-24 sm:$0x3] %vm583, %v582
    %s586 = scalar_lea.vmem %s0, 25
    %v587 = vld [vmem:[%s586] sm:$0x1]
    %s588 = scalar_lea.vmem %s0, 152
    %v589 = vld [vmem:[%s588] sm:$0x2]
    %vm590 = vcmask 1041409
    %v591 = vsel %vm590, %v589, %v587
    %592 = vrot.lane.b32.xlu0 %v591, 75
    %v593 = vpop.permute.xlu0 %592
    %vm594 = vcmask 638552
    %595 = vst.msk [vmem:[#allocation0] ss:$24 sm:$0x3] %vm594, %v593
    %s596 = scalar_lea.vmem %s0, 238
    %v597 = vld [vmem:[%s596] sm:$0x1]
    %s598 = scalar_lea.vmem %s0, 109
    %v599 = vld [vmem:[%s598] sm:$0x2]
    %vm600 = vcmask 1041409
    %v601 = vsel %vm600, %v599, %v597
    %602 = vrot.lane.b32.xlu0 %v601, 74
    %v603 = vpop.permute.xlu0 %602
    %vm604 = vcmask 630352
    %s605 = scalar_lea.vmem [#allocation0], 40
    %606 = vst.msk [vmem:[%s605] ss:$-24 sm:$0x3] %vm604, %v603
    %s607 = scalar_lea.vmem %s0, 195
    %v608 = vld [vmem:[%s607] sm:$0x1]
    %s609 = scalar_lea.vmem %s0, 66
    %v610 = vld [vmem:[%s609] sm:$0x2]
    %vm611 = vcmask 1041409
    %v612 = vsel %vm611, %v610, %v608
    %613 = vrot.lane.b32.xlu0 %v612, 73
    %v614 = vpop.permute.xlu0 %613
    %vm615 = vcmask 622152
    %s616 = scalar_lea.vmem [#allocation0], 32
    %617 = vst.msk [vmem:[%s616] ss:$-24 sm:$0x3] %vm615, %v614
    %s618 = scalar_lea.vmem %s0, 24
    %v619 = vld [vmem:[%s618] sm:$0x1]
    %s620 = scalar_lea.vmem %s0, 151
    %v621 = vld [vmem:[%s620] sm:$0x2]
    %vm622 = vcmask 1041409
    %v623 = vsel %vm622, %v621, %v619
    %624 = vrot.lane.b32.xlu0 %v623, 72
    %v625 = vpop.permute.xlu0 %624
    %vm626 = vcmask 613952
    %627 = vst.msk [vmem:[#allocation0] ss:$24 sm:$0x3] %vm626, %v625
    %s628 = scalar_lea.vmem %s0, 237
    %v629 = vld [vmem:[%s628] sm:$0x1]
    %s630 = scalar_lea.vmem %s0, 108
    %v631 = vld [vmem:[%s630] sm:$0x2]
    %vm632 = vcmask 1041409
    %v633 = vsel %vm632, %v631, %v629
    %634 = vrot.lane.b32.xlu0 %v633, 71
    %v635 = vpop.permute.xlu0 %634
    %vm636 = vcmask 605752
    %s637 = scalar_lea.vmem [#allocation0], 40
    %638 = vst.msk [vmem:[%s637] ss:$-24 sm:$0x3] %vm636, %v635
    %s639 = scalar_lea.vmem %s0, 194
    %v640 = vld [vmem:[%s639] sm:$0x1]
    %s641 = scalar_lea.vmem %s0, 65
    %v642 = vld [vmem:[%s641] sm:$0x2]
    %vm643 = vcmask 1041409
    %v644 = vsel %vm643, %v642, %v640
    %645 = vrot.lane.b32.xlu0 %v644, 70
    %v646 = vpop.permute.xlu0 %645
    %vm647 = vcmask 597552
    %s648 = scalar_lea.vmem [#allocation0], 32
    %649 = vst.msk [vmem:[%s648] ss:$-24 sm:$0x3] %vm647, %v646
    %s650 = scalar_lea.vmem %s0, 23
    %v651 = vld [vmem:[%s650] sm:$0x1]
    %s652 = scalar_lea.vmem %s0, 150
    %v653 = vld [vmem:[%s652] sm:$0x2]
    %vm654 = vcmask 1041409
    %v655 = vsel %vm654, %v653, %v651
    %656 = vrot.lane.b32.xlu0 %v655, 69
    %v657 = vpop.permute.xlu0 %656
    %vm658 = vcmask 589352
    %659 = vst.msk [vmem:[#allocation0] ss:$24 sm:$0x3] %vm658, %v657
    %s660 = scalar_lea.vmem %s0, 236
    %v661 = vld [vmem:[%s660] sm:$0x1]
    %s662 = scalar_lea.vmem %s0, 107
    %v663 = vld [vmem:[%s662] sm:$0x2]
    %vm664 = vcmask 1041409
    %v665 = vsel %vm664, %v663, %v661
    %666 = vrot.lane.b32.xlu0 %v665, 68
    %v667 = vpop.permute.xlu0 %666
    %vm668 = vcmask 581152
    %s669 = scalar_lea.vmem [#allocation0], 40
    %670 = vst.msk [vmem:[%s669] ss:$-24 sm:$0x3] %vm668, %v667
    %s671 = scalar_lea.vmem %s0, 193
    %v672 = vld [vmem:[%s671] sm:$0x1]
    %s673 = scalar_lea.vmem %s0, 64
    %v674 = vld [vmem:[%s673] sm:$0x2]
    %vm675 = vcmask 1041409
    %v676 = vsel %vm675, %v674, %v672
    %677 = vrot.lane.b32.xlu0 %v676, 67
    %v678 = vpop.permute.xlu0 %677
    %vm679 = vcmask 572952
    %s680 = scalar_lea.vmem [#allocation0], 32
    %681 = vst.msk [vmem:[%s680] ss:$-24 sm:$0x3] %vm679, %v678
    %s682 = scalar_lea.vmem %s0, 22
    %v683 = vld [vmem:[%s682] sm:$0x1]
    %s684 = scalar_lea.vmem %s0, 149
    %v685 = vld [vmem:[%s684] sm:$0x2]
    %vm686 = vcmask 1041409
    %v687 = vsel %vm686, %v685, %v683
    %688 = vrot.lane.b32.xlu0 %v687, 66
    %v689 = vpop.permute.xlu0 %688
    %vm690 = vcmask 564752
    %691 = vst.msk [vmem:[#allocation0] ss:$24 sm:$0x3] %vm690, %v689
    %s692 = scalar_lea.vmem %s0, 235
    %v693 = vld [vmem:[%s692] sm:$0x1]
    %s694 = scalar_lea.vmem %s0, 106
    %v695 = vld [vmem:[%s694] sm:$0x2]
    %vm696 = vcmask 1041409
    %v697 = vsel %vm696, %v695, %v693
    %698 = vrot.lane.b32.xlu0 %v697, 65
    %v699 = vpop.permute.xlu0 %698
    %vm700 = vcmask 556552
    %s701 = scalar_lea.vmem [#allocation0], 40
    %702 = vst.msk [vmem:[%s701] ss:$-24 sm:$0x3] %vm700, %v699
    %s703 = scalar_lea.vmem %s0, 192
    %v704 = vld [vmem:[%s703] sm:$0x1]
    %s705 = scalar_lea.vmem %s0, 63
    %v706 = vld [vmem:[%s705] sm:$0x2]
    %vm707 = vcmask 1041409
    %v708 = vsel %vm707, %v706, %v704
    %709 = vrot.lane.b32.xlu0 %v708, 64
    %v710 = vpop.permute.xlu0 %709
    %vm711 = vcmask 548352
    %s712 = scalar_lea.vmem [#allocation0], 32
    %713 = vst.msk [vmem:[%s712] ss:$-24 sm:$0x3] %vm711, %v710
    %s714 = scalar_lea.vmem %s0, 21
    %v715 = vld [vmem:[%s714] sm:$0x1]
    %s716 = scalar_lea.vmem %s0, 148
    %v717 = vld [vmem:[%s716] sm:$0x2]
    %vm718 = vcmask 1041409
    %v719 = vsel %vm718, %v717, %v715
    %720 = vrot.lane.b32.xlu0 %v719, 63
    %v721 = vpop.permute.xlu0 %720
    %vm722 = vcmask 540152
    %723 = vst.msk [vmem:[#allocation0] ss:$24 sm:$0x3] %vm722, %v721
    %s724 = scalar_lea.vmem %s0, 234
    %v725 = vld [vmem:[%s724] sm:$0x1]
    %s726 = scalar_lea.vmem %s0, 105
    %v727 = vld [vmem:[%s726] sm:$0x2]
    %vm728 = vcmask 1041409
    %v729 = vsel %vm728, %v727, %v725
    %730 = vrot.lane.b32.xlu0 %v729, 62
    %v731 = vpop.permute.xlu0 %730
    %vm732 = vcmask 531952
    %s733 = scalar_lea.vmem [#allocation0], 40
    %734 = vst.msk [vmem:[%s733] ss:$-24 sm:$0x3] %vm732, %v731
    %s735 = scalar_lea.vmem %s0, 191
    %v736 = vld [vmem:[%s735] sm:$0x1]
    %s737 = scalar_lea.vmem %s0, 62
    %v738 = vld [vmem:[%s737] sm:$0x2]
    %vm739 = vcmask 1041409
    %v740 = vsel %vm739, %v738, %v736
    %741 = vrot.lane.b32.xlu0 %v740, 61
    %v742 = vpop.permute.xlu0 %741
    %vm743 = vcmask 523752
    %s744 = scalar_lea.vmem [#allocation0], 32
    %745 = vst.msk [vmem:[%s744] ss:$-24 sm:$0x3] %vm743, %v742
    %s746 = scalar_lea.vmem %s0, 20
    %v747 = vld [vmem:[%s746] sm:$0x1]
    %s748 = scalar_lea.vmem %s0, 147
    %v749 = vld [vmem:[%s748] sm:$0x2]
    %vm750 = vcmask 1041409
    %v751 = vsel %vm750, %v749, %v747
    %752 = vrot.lane.b32.xlu0 %v751, 60
    %v753 = vpop.permute.xlu0 %752
    %vm754 = vcmask 515552
    %755 = vst.msk [vmem:[#allocation0] ss:$24 sm:$0x3] %vm754, %v753
    %s756 = scalar_lea.vmem %s0, 233
    %v757 = vld [vmem:[%s756] sm:$0x1]
    %s758 = scalar_lea.vmem %s0, 104
    %v759 = vld [vmem:[%s758] sm:$0x2]
    %vm760 = vcmask 1041409
    %v761 = vsel %vm760, %v759, %v757
    %762 = vrot.lane.b32.xlu0 %v761, 59
    %v763 = vpop.permute.xlu0 %762
    %vm764 = vcmask 507352
    %s765 = scalar_lea.vmem [#allocation0], 40
    %766 = vst.msk [vmem:[%s765] ss:$-24 sm:$0x3] %vm764, %v763
    %s767 = scalar_lea.vmem %s0, 190
    %v768 = vld [vmem:[%s767] sm:$0x1]
    %s769 = scalar_lea.vmem %s0, 61
    %v770 = vld [vmem:[%s769] sm:$0x2]
    %vm771 = vcmask 1041409
    %v772 = vsel %vm771, %v770, %v768
    %773 = vrot.lane.b32.xlu0 %v772, 58
    %v774 = vpop.permute.xlu0 %773
    %vm775 = vcmask 499152
    %s776 = scalar_lea.vmem [#allocation0], 32
    %777 = vst.msk [vmem:[%s776] ss:$-24 sm:$0x3] %vm775, %v774
    %s778 = scalar_lea.vmem %s0, 19
    %v779 = vld [vmem:[%s778] sm:$0x1]
    %s780 = scalar_lea.vmem %s0, 146
    %v781 = vld [vmem:[%s780] sm:$0x2]
    %vm782 = vcmask 1041409
    %v783 = vsel %vm782, %v781, %v779
    %784 = vrot.lane.b32.xlu0 %v783, 57
    %v785 = vpop.permute.xlu0 %784
    %vm786 = vcmask 490952
    %787 = vst.msk [vmem:[#allocation0] ss:$24 sm:$0x3] %vm786, %v785
    %s788 = scalar_lea.vmem %s0, 232
    %v789 = vld [vmem:[%s788] sm:$0x1]
    %s790 = scalar_lea.vmem %s0, 103
    %v791 = vld [vmem:[%s790] sm:$0x2]
    %vm792 = vcmask 1041409
    %v793 = vsel %vm792, %v791, %v789
    %794 = vrot.lane.b32.xlu0 %v793, 56
    %v795 = vpop.permute.xlu0 %794
    %vm796 = vcmask 482752
    %s797 = scalar_lea.vmem [#allocation0], 40
    %798 = vst.msk [vmem:[%s797] ss:$-24 sm:$0x3] %vm796, %v795
    %s799 = scalar_lea.vmem %s0, 189
    %v800 = vld [vmem:[%s799] sm:$0x1]
    %s801 = scalar_lea.vmem %s0, 60
    %v802 = vld [vmem:[%s801] sm:$0x2]
    %vm803 = vcmask 1041409
    %v804 = vsel %vm803, %v802, %v800
    %805 = vrot.lane.b32.xlu0 %v804, 55
    %v806 = vpop.permute.xlu0 %805
    %vm807 = vcmask 474552
    %s808 = scalar_lea.vmem [#allocation0], 32
    %809 = vst.msk [vmem:[%s808] ss:$-24 sm:$0x3] %vm807, %v806
    %s810 = scalar_lea.vmem %s0, 18
    %v811 = vld [vmem:[%s810] sm:$0x1]
    %s812 = scalar_lea.vmem %s0, 145
    %v813 = vld [vmem:[%s812] sm:$0x2]
    %vm814 = vcmask 1041409
    %v815 = vsel %vm814, %v813, %v811
    %816 = vrot.lane.b32.xlu0 %v815, 54
    %v817 = vpop.permute.xlu0 %816
    %vm818 = vcmask 466352
    %819 = vst.msk [vmem:[#allocation0] ss:$24 sm:$0x3] %vm818, %v817
    %s820 = scalar_lea.vmem %s0, 231
    %v821 = vld [vmem:[%s820] sm:$0x1]
    %s822 = scalar_lea.vmem %s0, 102
    %v823 = vld [vmem:[%s822] sm:$0x2]
    %vm824 = vcmask 1041409
    %v825 = vsel %vm824, %v823, %v821
    %826 = vrot.lane.b32.xlu0 %v825, 53
    %v827 = vpop.permute.xlu0 %826
    %vm828 = vcmask 458152
    %s829 = scalar_lea.vmem [#allocation0], 40
    %830 = vst.msk [vmem:[%s829] ss:$-24 sm:$0x3] %vm828, %v827
    %s831 = scalar_lea.vmem %s0, 188
    %v832 = vld [vmem:[%s831] sm:$0x1]
    %s833 = scalar_lea.vmem %s0, 59
    %v834 = vld [vmem:[%s833] sm:$0x2]
    %vm835 = vcmask 1041409
    %v836 = vsel %vm835, %v834, %v832
    %837 = vrot.lane.b32.xlu0 %v836, 52
    %v838 = vpop.permute.xlu0 %837
    %vm839 = vcmask 449952
    %s840 = scalar_lea.vmem [#allocation0], 32
    %841 = vst.msk [vmem:[%s840] ss:$-24 sm:$0x3] %vm839, %v838
    %s842 = scalar_lea.vmem %s0, 17
    %v843 = vld [vmem:[%s842] sm:$0x1]
    %s844 = scalar_lea.vmem %s0, 144
    %v845 = vld [vmem:[%s844] sm:$0x2]
    %vm846 = vcmask 1041409
    %v847 = vsel %vm846, %v845, %v843
    %848 = vrot.lane.b32.xlu0 %v847, 51
    %v849 = vpop.permute.xlu0 %848
    %vm850 = vcmask 441752
    %851 = vst.msk [vmem:[#allocation0] ss:$24 sm:$0x3] %vm850, %v849
    %s852 = scalar_lea.vmem %s0, 230
    %v853 = vld [vmem:[%s852] sm:$0x1]
    %s854 = scalar_lea.vmem %s0, 101
    %v855 = vld [vmem:[%s854] sm:$0x2]
    %vm856 = vcmask 1041409
    %v857 = vsel %vm856, %v855, %v853
    %858 = vrot.lane.b32.xlu0 %v857, 50
    %v859 = vpop.permute.xlu0 %858
    %vm860 = vcmask 433552
    %s861 = scalar_lea.vmem [#allocation0], 40
    %862 = vst.msk [vmem:[%s861] ss:$-24 sm:$0x3] %vm860, %v859
    %s863 = scalar_lea.vmem %s0, 187
    %v864 = vld [vmem:[%s863] sm:$0x1]
    %s865 = scalar_lea.vmem %s0, 58
    %v866 = vld [vmem:[%s865] sm:$0x2]
    %vm867 = vcmask 1041409
    %v868 = vsel %vm867, %v866, %v864
    %869 = vrot.lane.b32.xlu0 %v868, 49
    %v870 = vpop.permute.xlu0 %869
    %vm871 = vcmask 425352
    %s872 = scalar_lea.vmem [#allocation0], 32
    %873 = vst.msk [vmem:[%s872] ss:$-24 sm:$0x3] %vm871, %v870
    %s874 = scalar_lea.vmem %s0, 16
    %v875 = vld [vmem:[%s874] sm:$0x1]
    %s876 = scalar_lea.vmem %s0, 143
    %v877 = vld [vmem:[%s876] sm:$0x2]
    %vm878 = vcmask 1041409
    %v879 = vsel %vm878, %v877, %v875
    %880 = vrot.lane.b32.xlu0 %v879, 48
    %v881 = vpop.permute.xlu0 %880
    %vm882 = vcmask 417152
    %883 = vst.msk [vmem:[#allocation0] ss:$24 sm:$0x3] %vm882, %v881
    %s884 = scalar_lea.vmem %s0, 229
    %v885 = vld [vmem:[%s884] sm:$0x1]
    %s886 = scalar_lea.vmem %s0, 100
    %v887 = vld [vmem:[%s886] sm:$0x2]
    %vm888 = vcmask 1041409
    %v889 = vsel %vm888, %v887, %v885
    %890 = vrot.lane.b32.xlu0 %v889, 47
    %v891 = vpop.permute.xlu0 %890
    %vm892 = vcmask 408952
    %s893 = scalar_lea.vmem [#allocation0], 40
    %894 = vst.msk [vmem:[%s893] ss:$-24 sm:$0x3] %vm892, %v891
    %s895 = scalar_lea.vmem %s0, 186
    %v896 = vld [vmem:[%s895] sm:$0x1]
    %s897 = scalar_lea.vmem %s0, 57
    %v898 = vld [vmem:[%s897] sm:$0x2]
    %vm899 = vcmask 1041409
    %v900 = vsel %vm899, %v898, %v896
    %901 = vrot.lane.b32.xlu0 %v900, 46
    %v902 = vpop.permute.xlu0 %901
    %vm903 = vcmask 400752
    %s904 = scalar_lea.vmem [#allocation0], 32
    %905 = vst.msk [vmem:[%s904] ss:$-24 sm:$0x3] %vm903, %v902
    %s906 = scalar_lea.vmem %s0, 15
    %v907 = vld [vmem:[%s906] sm:$0x1]
    %s908 = scalar_lea.vmem %s0, 142
    %v909 = vld [vmem:[%s908] sm:$0x2]
    %vm910 = vcmask 1041409
    %v911 = vsel %vm910, %v909, %v907
    %912 = vrot.lane.b32.xlu0 %v911, 45
    %v913 = vpop.permute.xlu0 %912
    %vm914 = vcmask 392552
    %915 = vst.msk [vmem:[#allocation0] ss:$24 sm:$0x3] %vm914, %v913
    %s916 = scalar_lea.vmem %s0, 228
    %v917 = vld [vmem:[%s916] sm:$0x1]
    %s918 = scalar_lea.vmem %s0, 99
    %v919 = vld [vmem:[%s918] sm:$0x2]
    %vm920 = vcmask 1041409
    %v921 = vsel %vm920, %v919, %v917
    %922 = vrot.lane.b32.xlu0 %v921, 44
    %v923 = vpop.permute.xlu0 %922
    %vm924 = vcmask 384352
    %s925 = scalar_lea.vmem [#allocation0], 40
    %926 = vst.msk [vmem:[%s925] ss:$-24 sm:$0x3] %vm924, %v923
    %s927 = scalar_lea.vmem %s0, 185
    %v928 = vld [vmem:[%s927] sm:$0x1]
    %s929 = scalar_lea.vmem %s0, 56
    %v930 = vld [vmem:[%s929] sm:$0x2]
    %vm931 = vcmask 1041409
    %v932 = vsel %vm931, %v930, %v928
    %933 = vrot.lane.b32.xlu0 %v932, 43
    %v934 = vpop.permute.xlu0 %933
    %vm935 = vcmask 376152
    %s936 = scalar_lea.vmem [#allocation0], 32
    %937 = vst.msk [vmem:[%s936] ss:$-24 sm:$0x3] %vm935, %v934
    %s938 = scalar_lea.vmem %s0, 14
    %v939 = vld [vmem:[%s938] sm:$0x1]
    %s940 = scalar_lea.vmem %s0, 141
    %v941 = vld [vmem:[%s940] sm:$0x2]
    %vm942 = vcmask 1041409
    %v943 = vsel %vm942, %v941, %v939
    %944 = vrot.lane.b32.xlu0 %v943, 42
    %v945 = vpop.permute.xlu0 %944
    %vm946 = vcmask 367952
    %947 = vst.msk [vmem:[#allocation0] ss:$24 sm:$0x3] %vm946, %v945
    %s948 = scalar_lea.vmem %s0, 227
    %v949 = vld [vmem:[%s948] sm:$0x1]
    %s950 = scalar_lea.vmem %s0, 98
    %v951 = vld [vmem:[%s950] sm:$0x2]
    %vm952 = vcmask 1041409
    %v953 = vsel %vm952, %v951, %v949
    %954 = vrot.lane.b32.xlu0 %v953, 41
    %v955 = vpop.permute.xlu0 %954
    %vm956 = vcmask 359752
    %s957 = scalar_lea.vmem [#allocation0], 40
    %958 = vst.msk [vmem:[%s957] ss:$-24 sm:$0x3] %vm956, %v955
    %s959 = scalar_lea.vmem %s0, 184
    %v960 = vld [vmem:[%s959] sm:$0x1]
    %s961 = scalar_lea.vmem %s0, 55
    %v962 = vld [vmem:[%s961] sm:$0x2]
    %vm963 = vcmask 1041409
    %v964 = vsel %vm963, %v962, %v960
    %965 = vrot.lane.b32.xlu0 %v964, 40
    %v966 = vpop.permute.xlu0 %965
    %vm967 = vcmask 351552
    %s968 = scalar_lea.vmem [#allocation0], 32
    %969 = vst.msk [vmem:[%s968] ss:$-24 sm:$0x3] %vm967, %v966
    %s970 = scalar_lea.vmem %s0, 13
    %v971 = vld [vmem:[%s970] sm:$0x1]
    %s972 = scalar_lea.vmem %s0, 140
    %v973 = vld [vmem:[%s972] sm:$0x2]
    %vm974 = vcmask 1041409
    %v975 = vsel %vm974, %v973, %v971
    %976 = vrot.lane.b32.xlu0 %v975, 39
    %v977 = vpop.permute.xlu0 %976
    %vm978 = vcmask 343352
    %979 = vst.msk [vmem:[#allocation0] ss:$24 sm:$0x3] %vm978, %v977
    %s980 = scalar_lea.vmem %s0, 226
    %v981 = vld [vmem:[%s980] sm:$0x1]
    %s982 = scalar_lea.vmem %s0, 97
    %v983 = vld [vmem:[%s982] sm:$0x2]
    %vm984 = vcmask 1041409
    %v985 = vsel %vm984, %v983, %v981
    %986 = vrot.lane.b32.xlu0 %v985, 38
    %v987 = vpop.permute.xlu0 %986
    %vm988 = vcmask 335152
    %s989 = scalar_lea.vmem [#allocation0], 40
    %990 = vst.msk [vmem:[%s989] ss:$-24 sm:$0x3] %vm988, %v987
    %s991 = scalar_lea.vmem %s0, 183
    %v992 = vld [vmem:[%s991] sm:$0x1]
    %s993 = scalar_lea.vmem %s0, 54
    %v994 = vld [vmem:[%s993] sm:$0x2]
    %vm995 = vcmask 1041409
    %v996 = vsel %vm995, %v994, %v992
    %997 = vrot.lane.b32.xlu0 %v996, 37
    %v998 = vpop.permute.xlu0 %997
    %vm999 = vcmask 326952
    %s1000 = scalar_lea.vmem [#allocation0], 32
    %1001 = vst.msk [vmem:[%s1000] ss:$-24 sm:$0x3] %vm999, %v998
    %s1002 = scalar_lea.vmem %s0, 12
    %v1003 = vld [vmem:[%s1002] sm:$0x1]
    %s1004 = scalar_lea.vmem %s0, 139
    %v1005 = vld [vmem:[%s1004] sm:$0x2]
    %vm1006 = vcmask 1041409
    %v1007 = vsel %vm1006, %v1005, %v1003
    %1008 = vrot.lane.b32.xlu0 %v1007, 36
    %v1009 = vpop.permute.xlu0 %1008
    %vm1010 = vcmask 318752
    %1011 = vst.msk [vmem:[#allocation0] ss:$24 sm:$0x3] %vm1010, %v1009
    %s1012 = scalar_lea.vmem %s0, 225
    %v1013 = vld [vmem:[%s1012] sm:$0x1]
    %s1014 = scalar_lea.vmem %s0, 96
    %v1015 = vld [vmem:[%s1014] sm:$0x2]
    %vm1016 = vcmask 1041409
    %v1017 = vsel %vm1016, %v1015, %v1013
    %1018 = vrot.lane.b32.xlu0 %v1017, 35
    %v1019 = vpop.permute.xlu0 %1018
    %vm1020 = vcmask 310552
    %s1021 = scalar_lea.vmem [#allocation0], 40
    %1022 = vst.msk [vmem:[%s1021] ss:$-24 sm:$0x3] %vm1020, %v1019
    %s1023 = scalar_lea.vmem %s0, 182
    %v1024 = vld [vmem:[%s1023] sm:$0x1]
    %s1025 = scalar_lea.vmem %s0, 53
    %v1026 = vld [vmem:[%s1025] sm:$0x2]
    %vm1027 = vcmask 1041409
    %v1028 = vsel %vm1027, %v1026, %v1024
    %1029 = vrot.lane.b32.xlu0 %v1028, 34
    %v1030 = vpop.permute.xlu0 %1029
    %vm1031 = vcmask 302352
    %s1032 = scalar_lea.vmem [#allocation0], 32
    %1033 = vst.msk [vmem:[%s1032] ss:$-24 sm:$0x3] %vm1031, %v1030
    %s1034 = scalar_lea.vmem %s0, 11
    %v1035 = vld [vmem:[%s1034] sm:$0x1]
    %s1036 = scalar_lea.vmem %s0, 138
    %v1037 = vld [vmem:[%s1036] sm:$0x2]
    %vm1038 = vcmask 1041409
    %v1039 = vsel %vm1038, %v1037, %v1035
    %1040 = vrot.lane.b32.xlu0 %v1039, 33
    %v1041 = vpop.permute.xlu0 %1040
    %vm1042 = vcmask 294152
    %1043 = vst.msk [vmem:[#allocation0] ss:$24 sm:$0x3] %vm1042, %v1041
    %s1044 = scalar_lea.vmem %s0, 224
    %v1045 = vld [vmem:[%s1044] sm:$0x1]
    %s1046 = scalar_lea.vmem %s0, 95
    %v1047 = vld [vmem:[%s1046] sm:$0x2]
    %vm1048 = vcmask 1041409
    %v1049 = vsel %vm1048, %v1047, %v1045
    %1050 = vrot.lane.b32.xlu0 %v1049, 32
    %v1051 = vpop.permute.xlu0 %1050
    %vm1052 = vcmask 285952
    %s1053 = scalar_lea.vmem [#allocation0], 40
    %1054 = vst.msk [vmem:[%s1053] ss:$-24 sm:$0x3] %vm1052, %v1051
    %s1055 = scalar_lea.vmem %s0, 181
    %v1056 = vld [vmem:[%s1055] sm:$0x1]
    %s1057 = scalar_lea.vmem %s0, 52
    %v1058 = vld [vmem:[%s1057] sm:$0x2]
    %vm1059 = vcmask 1041409
    %v1060 = vsel %vm1059, %v1058, %v1056
    %1061 = vrot.lane.b32.xlu0 %v1060, 31
    %v1062 = vpop.permute.xlu0 %1061
    %vm1063 = vcmask 277752
    %s1064 = scalar_lea.vmem [#allocation0], 32
    %1065 = vst.msk [vmem:[%s1064] ss:$-24 sm:$0x3] %vm1063, %v1062
    %s1066 = scalar_lea.vmem %s0, 10
    %v1067 = vld [vmem:[%s1066] sm:$0x1]
    %s1068 = scalar_lea.vmem %s0, 137
    %v1069 = vld [vmem:[%s1068] sm:$0x2]
    %vm1070 = vcmask 1041409
    %v1071 = vsel %vm1070, %v1069, %v1067
    %1072 = vrot.lane.b32.xlu0 %v1071, 30
    %v1073 = vpop.permute.xlu0 %1072
    %vm1074 = vcmask 269552
    %1075 = vst.msk [vmem:[#allocation0] ss:$24 sm:$0x3] %vm1074, %v1073
    %s1076 = scalar_lea.vmem %s0, 223
    %v1077 = vld [vmem:[%s1076] sm:$0x1]
    %s1078 = scalar_lea.vmem %s0, 94
    %v1079 = vld [vmem:[%s1078] sm:$0x2]
    %vm1080 = vcmask 1041409
    %v1081 = vsel %vm1080, %v1079, %v1077
    %1082 = vrot.lane.b32.xlu0 %v1081, 29
    %v1083 = vpop.permute.xlu0 %1082
    %vm1084 = vcmask 261352
    %s1085 = scalar_lea.vmem [#allocation0], 40
    %1086 = vst.msk [vmem:[%s1085] ss:$-24 sm:$0x3] %vm1084, %v1083
    %s1087 = scalar_lea.vmem %s0, 180
    %v1088 = vld [vmem:[%s1087] sm:$0x1]
    %s1089 = scalar_lea.vmem %s0, 51
    %v1090 = vld [vmem:[%s1089] sm:$0x2]
    %vm1091 = vcmask 1041409
    %v1092 = vsel %vm1091, %v1090, %v1088
    %1093 = vrot.lane.b32.xlu0 %v1092, 28
    %v1094 = vpop.permute.xlu0 %1093
    %vm1095 = vcmask 253152
    %s1096 = scalar_lea.vmem [#allocation0], 32
    %1097 = vst.msk [vmem:[%s1096] ss:$-24 sm:$0x3] %vm1095, %v1094
    %s1098 = scalar_lea.vmem %s0, 9
    %v1099 = vld [vmem:[%s1098] sm:$0x1]
    %s1100 = scalar_lea.vmem %s0, 136
    %v1101 = vld [vmem:[%s1100] sm:$0x2]
    %vm1102 = vcmask 1041409
    %v1103 = vsel %vm1102, %v1101, %v1099
    %1104 = vrot.lane.b32.xlu0 %v1103, 27
    %v1105 = vpop.permute.xlu0 %1104
    %vm1106 = vcmask 244952
    %1107 = vst.msk [vmem:[#allocation0] ss:$24 sm:$0x3] %vm1106, %v1105
    %s1108 = scalar_lea.vmem %s0, 222
    %v1109 = vld [vmem:[%s1108] sm:$0x1]
    %s1110 = scalar_lea.vmem %s0, 93
    %v1111 = vld [vmem:[%s1110] sm:$0x2]
    %vm1112 = vcmask 1041409
    %v1113 = vsel %vm1112, %v1111, %v1109
    %1114 = vrot.lane.b32.xlu0 %v1113, 26
    %v1115 = vpop.permute.xlu0 %1114
    %vm1116 = vcmask 236752
    %s1117 = scalar_lea.vmem [#allocation0], 40
    %1118 = vst.msk [vmem:[%s1117] ss:$-24 sm:$0x3] %vm1116, %v1115
    %s1119 = scalar_lea.vmem %s0, 179
    %v1120 = vld [vmem:[%s1119] sm:$0x1]
    %s1121 = scalar_lea.vmem %s0, 50
    %v1122 = vld [vmem:[%s1121] sm:$0x2]
    %vm1123 = vcmask 1041409
    %v1124 = vsel %vm1123, %v1122, %v1120
    %1125 = vrot.lane.b32.xlu0 %v1124, 25
    %v1126 = vpop.permute.xlu0 %1125
    %vm1127 = vcmask 228552
    %s1128 = scalar_lea.vmem [#allocation0], 32
    %1129 = vst.msk [vmem:[%s1128] ss:$-24 sm:$0x3] %vm1127, %v1126
    %s1130 = scalar_lea.vmem %s0, 8
    %v1131 = vld [vmem:[%s1130] sm:$0x1]
    %s1132 = scalar_lea.vmem %s0, 135
    %v1133 = vld [vmem:[%s1132] sm:$0x2]
    %vm1134 = vcmask 1041409
    %v1135 = vsel %vm1134, %v1133, %v1131
    %1136 = vrot.lane.b32.xlu0 %v1135, 24
    %v1137 = vpop.permute.xlu0 %1136
    %vm1138 = vcmask 220352
    %1139 = vst.msk [vmem:[#allocation0] ss:$24 sm:$0x3] %vm1138, %v1137
    %s1140 = scalar_lea.vmem %s0, 221
    %v1141 = vld [vmem:[%s1140] sm:$0x1]
    %s1142 = scalar_lea.vmem %s0, 92
    %v1143 = vld [vmem:[%s1142] sm:$0x2]
    %vm1144 = vcmask 1041409
    %v1145 = vsel %vm1144, %v1143, %v1141
    %1146 = vrot.lane.b32.xlu0 %v1145, 23
    %v1147 = vpop.permute.xlu0 %1146
    %vm1148 = vcmask 212152
    %s1149 = scalar_lea.vmem [#allocation0], 40
    %1150 = vst.msk [vmem:[%s1149] ss:$-24 sm:$0x3] %vm1148, %v1147
    %s1151 = scalar_lea.vmem %s0, 178
    %v1152 = vld [vmem:[%s1151] sm:$0x1]
    %s1153 = scalar_lea.vmem %s0, 49
    %v1154 = vld [vmem:[%s1153] sm:$0x2]
    %vm1155 = vcmask 1041409
    %v1156 = vsel %vm1155, %v1154, %v1152
    %1157 = vrot.lane.b32.xlu0 %v1156, 22
    %v1158 = vpop.permute.xlu0 %1157
    %vm1159 = vcmask 203952
    %s1160 = scalar_lea.vmem [#allocation0], 32
    %1161 = vst.msk [vmem:[%s1160] ss:$-24 sm:$0x3] %vm1159, %v1158
    %s1162 = scalar_lea.vmem %s0, 7
    %v1163 = vld [vmem:[%s1162] sm:$0x1]
    %s1164 = scalar_lea.vmem %s0, 134
    %v1165 = vld [vmem:[%s1164] sm:$0x2]
    %vm1166 = vcmask 1041409
    %v1167 = vsel %vm1166, %v1165, %v1163
    %1168 = vrot.lane.b32.xlu0 %v1167, 21
    %v1169 = vpop.permute.xlu0 %1168
    %vm1170 = vcmask 195752
    %1171 = vst.msk [vmem:[#allocation0] ss:$24 sm:$0x3] %vm1170, %v1169
    %s1172 = scalar_lea.vmem %s0, 220
    %v1173 = vld [vmem:[%s1172] sm:$0x1]
    %s1174 = scalar_lea.vmem %s0, 91
    %v1175 = vld [vmem:[%s1174] sm:$0x2]
    %vm1176 = vcmask 1041409
    %v1177 = vsel %vm1176, %v1175, %v1173
    %1178 = vrot.lane.b32.xlu0 %v1177, 20
    %v1179 = vpop.permute.xlu0 %1178
    %vm1180 = vcmask 187552
    %s1181 = scalar_lea.vmem [#allocation0], 40
    %1182 = vst.msk [vmem:[%s1181] ss:$-24 sm:$0x3] %vm1180, %v1179
    %s1183 = scalar_lea.vmem %s0, 177
    %v1184 = vld [vmem:[%s1183] sm:$0x1]
    %s1185 = scalar_lea.vmem %s0, 48
    %v1186 = vld [vmem:[%s1185] sm:$0x2]
    %vm1187 = vcmask 1041409
    %v1188 = vsel %vm1187, %v1186, %v1184
    %1189 = vrot.lane.b32.xlu0 %v1188, 19
    %v1190 = vpop.permute.xlu0 %1189
    %vm1191 = vcmask 179352
    %s1192 = scalar_lea.vmem [#allocation0], 32
    %1193 = vst.msk [vmem:[%s1192] ss:$-24 sm:$0x3] %vm1191, %v1190
    %s1194 = scalar_lea.vmem %s0, 6
    %v1195 = vld [vmem:[%s1194] sm:$0x1]
    %s1196 = scalar_lea.vmem %s0, 133
    %v1197 = vld [vmem:[%s1196] sm:$0x2]
    %vm1198 = vcmask 1041409
    %v1199 = vsel %vm1198, %v1197, %v1195
    %1200 = vrot.lane.b32.xlu0 %v1199, 18
    %v1201 = vpop.permute.xlu0 %1200
    %vm1202 = vcmask 171152
    %1203 = vst.msk [vmem:[#allocation0] ss:$24 sm:$0x3] %vm1202, %v1201
    %s1204 = scalar_lea.vmem %s0, 219
    %v1205 = vld [vmem:[%s1204] sm:$0x1]
    %s1206 = scalar_lea.vmem %s0, 90
    %v1207 = vld [vmem:[%s1206] sm:$0x2]
    %vm1208 = vcmask 1041409
    %v1209 = vsel %vm1208, %v1207, %v1205
    %1210 = vrot.lane.b32.xlu0 %v1209, 17
    %v1211 = vpop.permute.xlu0 %1210
    %vm1212 = vcmask 162952
    %s1213 = scalar_lea.vmem [#allocation0], 40
    %1214 = vst.msk [vmem:[%s1213] ss:$-24 sm:$0x3] %vm1212, %v1211
    %s1215 = scalar_lea.vmem %s0, 176
    %v1216 = vld [vmem:[%s1215] sm:$0x1]
    %s1217 = scalar_lea.vmem %s0, 47
    %v1218 = vld [vmem:[%s1217] sm:$0x2]
    %vm1219 = vcmask 1041409
    %v1220 = vsel %vm1219, %v1218, %v1216
    %1221 = vrot.lane.b32.xlu0 %v1220, 16
    %v1222 = vpop.permute.xlu0 %1221
    %vm1223 = vcmask 154752
    %s1224 = scalar_lea.vmem [#allocation0], 32
    %1225 = vst.msk [vmem:[%s1224] ss:$-24 sm:$0x3] %vm1223, %v1222
    %s1226 = scalar_lea.vmem %s0, 5
    %v1227 = vld [vmem:[%s1226] sm:$0x1]
    %s1228 = scalar_lea.vmem %s0, 132
    %v1229 = vld [vmem:[%s1228] sm:$0x2]
    %vm1230 = vcmask 1041409
    %v1231 = vsel %vm1230, %v1229, %v1227
    %1232 = vrot.lane.b32.xlu0 %v1231, 15
    %v1233 = vpop.permute.xlu0 %1232
    %vm1234 = vcmask 146552
    %1235 = vst.msk [vmem:[#allocation0] ss:$24 sm:$0x3] %vm1234, %v1233
    %s1236 = scalar_lea.vmem %s0, 218
    %v1237 = vld [vmem:[%s1236] sm:$0x1]
    %s1238 = scalar_lea.vmem %s0, 89
    %v1239 = vld [vmem:[%s1238] sm:$0x2]
    %vm1240 = vcmask 1041409
    %v1241 = vsel %vm1240, %v1239, %v1237
    %1242 = vrot.lane.b32.xlu0 %v1241, 14
    %v1243 = vpop.permute.xlu0 %1242
    %vm1244 = vcmask 138352
    %s1245 = scalar_lea.vmem [#allocation0], 40
    %1246 = vst.msk [vmem:[%s1245] ss:$-24 sm:$0x3] %vm1244, %v1243
    %s1247 = scalar_lea.vmem %s0, 175
    %v1248 = vld [vmem:[%s1247] sm:$0x1]
    %s1249 = scalar_lea.vmem %s0, 46
    %v1250 = vld [vmem:[%s1249] sm:$0x2]
    %vm1251 = vcmask 1041409
    %v1252 = vsel %vm1251, %v1250, %v1248
    %1253 = vrot.lane.b32.xlu0 %v1252, 13
    %v1254 = vpop.permute.xlu0 %1253
    %vm1255 = vcmask 130152
    %s1256 = scalar_lea.vmem [#allocation0], 32
    %1257 = vst.msk [vmem:[%s1256] ss:$-24 sm:$0x3] %vm1255, %v1254
    %s1258 = scalar_lea.vmem %s0, 4
    %v1259 = vld [vmem:[%s1258] sm:$0x1]
    %s1260 = scalar_lea.vmem %s0, 131
    %v1261 = vld [vmem:[%s1260] sm:$0x2]
    %vm1262 = vcmask 1041409
    %v1263 = vsel %vm1262, %v1261, %v1259
    %1264 = vrot.lane.b32.xlu0 %v1263, 12
    %v1265 = vpop.permute.xlu0 %1264
    %vm1266 = vcmask 121952
    %1267 = vst.msk [vmem:[#allocation0] ss:$24 sm:$0x3] %vm1266, %v1265
    %s1268 = scalar_lea.vmem %s0, 217
    %v1269 = vld [vmem:[%s1268] sm:$0x1]
    %s1270 = scalar_lea.vmem %s0, 88
    %v1271 = vld [vmem:[%s1270] sm:$0x2]
    %vm1272 = vcmask 1041409
    %v1273 = vsel %vm1272, %v1271, %v1269
    %1274 = vrot.lane.b32.xlu0 %v1273, 11
    %v1275 = vpop.permute.xlu0 %1274
    %vm1276 = vcmask 113752
    %s1277 = scalar_lea.vmem [#allocation0], 40
    %1278 = vst.msk [vmem:[%s1277] ss:$-24 sm:$0x3] %vm1276, %v1275
    %s1279 = scalar_lea.vmem %s0, 174
    %v1280 = vld [vmem:[%s1279] sm:$0x1]
    %s1281 = scalar_lea.vmem %s0, 45
    %v1282 = vld [vmem:[%s1281] sm:$0x2]
    %vm1283 = vcmask 1041409
    %v1284 = vsel %vm1283, %v1282, %v1280
    %1285 = vrot.lane.b32.xlu0 %v1284, 10
    %v1286 = vpop.permute.xlu0 %1285
    %vm1287 = vcmask 105552
    %s1288 = scalar_lea.vmem [#allocation0], 32
    %1289 = vst.msk [vmem:[%s1288] ss:$-24 sm:$0x3] %vm1287, %v1286
    %s1290 = scalar_lea.vmem %s0, 3
    %v1291 = vld [vmem:[%s1290] sm:$0x1]
    %s1292 = scalar_lea.vmem %s0, 130
    %v1293 = vld [vmem:[%s1292] sm:$0x2]
    %vm1294 = vcmask 1041409
    %v1295 = vsel %vm1294, %v1293, %v1291
    %1296 = vrot.lane.b32.xlu0 %v1295, 9
    %v1297 = vpop.permute.xlu0 %1296
    %vm1298 = vcmask 97352
    %1299 = vst.msk [vmem:[#allocation0] ss:$24 sm:$0x3] %vm1298, %v1297
    %s1300 = scalar_lea.vmem %s0, 216
    %v1301 = vld [vmem:[%s1300] sm:$0x1]
    %s1302 = scalar_lea.vmem %s0, 87
    %v1303 = vld [vmem:[%s1302] sm:$0x2]
    %vm1304 = vcmask 1041409
    %v1305 = vsel %vm1304, %v1303, %v1301
    %1306 = vrot.lane.b32.xlu0 %v1305, 8
    %v1307 = vpop.permute.xlu0 %1306
    %vm1308 = vcmask 89152
    %s1309 = scalar_lea.vmem [#allocation0], 40
    %1310 = vst.msk [vmem:[%s1309] ss:$-24 sm:$0x3] %vm1308, %v1307
    %s1311 = scalar_lea.vmem %s0, 173
    %v1312 = vld [vmem:[%s1311] sm:$0x1]
    %s1313 = scalar_lea.vmem %s0, 44
    %v1314 = vld [vmem:[%s1313] sm:$0x2]
    %vm1315 = vcmask 1041409
    %v1316 = vsel %vm1315, %v1314, %v1312
    %1317 = vrot.lane.b32.xlu0 %v1316, 7
    %v1318 = vpop.permute.xlu0 %1317
    %vm1319 = vcmask 80952
    %s1320 = scalar_lea.vmem [#allocation0], 32
    %1321 = vst.msk [vmem:[%s1320] ss:$-24 sm:$0x3] %vm1319, %v1318
    %s1322 = scalar_lea.vmem %s0, 2
    %v1323 = vld [vmem:[%s1322] sm:$0x1]
    %s1324 = scalar_lea.vmem %s0, 129
    %v1325 = vld [vmem:[%s1324] sm:$0x2]
    %vm1326 = vcmask 1041409
    %v1327 = vsel %vm1326, %v1325, %v1323
    %1328 = vrot.lane.b32.xlu0 %v1327, 6
    %v1329 = vpop.permute.xlu0 %1328
    %vm1330 = vcmask 72752
    %1331 = vst.msk [vmem:[#allocation0] ss:$24 sm:$0x3] %vm1330, %v1329
    %s1332 = scalar_lea.vmem %s0, 215
    %v1333 = vld [vmem:[%s1332] sm:$0x1]
    %s1334 = scalar_lea.vmem %s0, 86
    %v1335 = vld [vmem:[%s1334] sm:$0x2]
    %vm1336 = vcmask 1041409
    %v1337 = vsel %vm1336, %v1335, %v1333
    %1338 = vrot.lane.b32.xlu0 %v1337, 5
    %v1339 = vpop.permute.xlu0 %1338
    %vm1340 = vcmask 64552
    %s1341 = scalar_lea.vmem [#allocation0], 40
    %1342 = vst.msk [vmem:[%s1341] ss:$-24 sm:$0x3] %vm1340, %v1339
    %s1343 = scalar_lea.vmem %s0, 172
    %v1344 = vld [vmem:[%s1343] sm:$0x1]
    %s1345 = scalar_lea.vmem %s0, 43
    %v1346 = vld [vmem:[%s1345] sm:$0x2]
    %vm1347 = vcmask 1041409
    %v1348 = vsel %vm1347, %v1346, %v1344
    %1349 = vrot.lane.b32.xlu0 %v1348, 4
    %v1350 = vpop.permute.xlu0 %1349
    %vm1351 = vcmask 56352
    %s1352 = scalar_lea.vmem [#allocation0], 32
    %1353 = vst.msk [vmem:[%s1352] ss:$-24 sm:$0x3] %vm1351, %v1350
    %s1354 = scalar_lea.vmem %s0, 1
    %v1355 = vld [vmem:[%s1354] sm:$0x1]
    %s1356 = scalar_lea.vmem %s0, 128
    %v1357 = vld [vmem:[%s1356] sm:$0x2]
    %vm1358 = vcmask 1041409
    %v1359 = vsel %vm1358, %v1357, %v1355
    %1360 = vrot.lane.b32.xlu0 %v1359, 3
    %v1361 = vpop.permute.xlu0 %1360
    %vm1362 = vcmask 48152
    %1363 = vst.msk [vmem:[#allocation0] ss:$24 sm:$0x3] %vm1362, %v1361
    %s1364 = scalar_lea.vmem %s0, 214
    %v1365 = vld [vmem:[%s1364] sm:$0x1]
    %s1366 = scalar_lea.vmem %s0, 85
    %v1367 = vld [vmem:[%s1366] sm:$0x2]
    %vm1368 = vcmask 1041409
    %v1369 = vsel %vm1368, %v1367, %v1365
    %1370 = vrot.lane.b32.xlu0 %v1369, 2
    %v1371 = vpop.permute.xlu0 %1370
    %vm1372 = vcmask 39952
    %s1373 = scalar_lea.vmem [#allocation0], 40
    %1374 = vst.msk [vmem:[%s1373] ss:$-24 sm:$0x3] %vm1372, %v1371
    %s1375 = scalar_lea.vmem %s0, 171
    %v1376 = vld [vmem:[%s1375] sm:$0x1]
    %s1377 = scalar_lea.vmem %s0, 42
    %v1378 = vld [vmem:[%s1377] sm:$0x2]
    %vm1379 = vcmask 1041409
    %v1380 = vsel %vm1379, %v1378, %v1376
    %1381 = vrot.lane.b32.xlu0 %v1380, 1
    %v1382 = vpop.permute.xlu0 %1381
    %vm1383 = vcmask 31752
    %s1384 = scalar_lea.vmem [#allocation0], 32
    %1385 = vst.msk [vmem:[%s1384] ss:$-24 sm:$0x3] %vm1383, %v1382
    %s1387 = ssub.s32 2, 1
    %v1388 = vld [vmem:[#allocation0] sm:%s1387]
    %s1390 = ssub.s32 2, 1
    %1391 = vst [vmem:[%s1] sm:%s1390] %v1388
    %s1392 = scalar_lea.vmem [#allocation0], 8
    %v1393 = vld [vmem:[%s1392] sm:%s1387]
    %s1395 = ssub.s32 2, 1
    %s1396 = scalar_lea.vmem %s1, 1
    %1397 = vst [vmem:[%s1396] sm:%s1395] %v1393
    %s1398 = scalar_lea.vmem [#allocation0], 16
    %v1399 = vld [vmem:[%s1398] sm:%s1387]
    %s1401 = ssub.s32 2, 1
    %s1402 = scalar_lea.vmem %s1, 2
    %1403 = vst [vmem:[%s1402] sm:%s1401] %v1399
    %s1404 = scalar_lea.vmem [#allocation0], 24
    %v1405 = vld [vmem:[%s1404] sm:%s1387]
    %s1407 = ssub.s32 2, 1
    %s1408 = scalar_lea.vmem %s1, 3
    %1409 = vst [vmem:[%s1408] sm:%s1407] %v1405
    %s1410 = scalar_lea.vmem [#allocation0], 32
    %v1411 = vld [vmem:[%s1410] sm:%s1387]
    %s1413 = ssub.s32 2, 1
    %s1414 = scalar_lea.vmem %s1, 4
    %1415 = vst [vmem:[%s1414] sm:%s1413] %v1411
    %s1416 = scalar_lea.vmem [#allocation0], 40
    %v1417 = vld [vmem:[%s1416] sm:%s1387]
    %s1419 = ssub.s32 2, 1
    %s1420 = scalar_lea.vmem %s1, 5
    %1421 = vst [vmem:[%s1420] sm:%s1419] %v1417

// kernel: histo_generator_forward.11
$region0: #{histo_generator_forward.11}
  #allocation0 [shape = 'u32[]', space=smem, size = 0x4, offset = 0x4, fixed_abs, tag = 'smem constant byte address 0x4 - core index']
  #allocation1 [shape = 'u32[72,128]{1,0:T(1,128)}', space=vmem, size = 0x9000, scoped, tag = 'internal scratch']
  %s0 = inlined_call_operand.vmem [shape: f32[2,768], index: 0, kind: input, shape index: {}]
  %s1 = inlined_call_operand.vmem [shape: f32[1,768], index: 1, kind: input, shape index: {}]
  %s2 = inlined_call_operand.vmem [shape: f32[2,768], index: 2, kind: output, shape index: {}]
  %s3 = sld [smem:[#allocation0]]
  $region18: #{histo_generator_forward.11} parent=0
    _
  %s5 = ssub.s32 1, %s3
  %s6 = scalar_select 0, %s5, %s3
  // Predicated region
  $region2: #{histo_generator_forward.11} parent=0 // pred_check
    _
  $region3: #{histo_generator_forward.11} parent=0 // pred_check_branch
    %8 = sbr.rel (0) target = $region5
  $region4: #{histo_generator_forward.11} parent=0 // pred_region
    _
  $region5: #{histo_generator_forward.11} parent=0 // pred_fallthru
    _
  // Predicated region
  $region6: #{histo_generator_forward.11} parent=0 // pred_check
    _
  $region7: #{histo_generator_forward.11} parent=0 // pred_check_branch
    %10 = sbr.rel (0) target = $region9
  $region8: #{histo_generator_forward.11} parent=0 // pred_region
    _
  $region9: #{histo_generator_forward.11} parent=0 // pred_fallthru
    _
  %v11 = vld [vmem:[%s0] sm:$0xff]
  %v12 = vld [vmem:[%s0 + $0x8] sm:$0xf]
  %v13 = vld [vmem:[%s1] sm:$0x3f]
  %v15 = vperm.slane %v13, 0
  %v16 = vperm.slane %v13, 1
  %v17 = vperm.slane %v13, 2
  %v18 = vperm.slane %v13, 3
  %v19 = vperm.slane %v13, 4
  %v20 = vperm.slane %v13, 5
  %v21 = vrot.slane %v16, 6
  %v22 = vrot.slane %v17, 4
  %v23 = vrot.slane %v18, 2
  %v24 = vrot.slane %v20, 6
  %vm25 = vcmask 1041408
  %v26 = vsel %vm25, %v15, %v21
  %vm27 = vcmask 1045508
  %v28 = vsel %vm27, %v22, %v23
  %vm29 = vcmask 1043456
  %v30 = vsel %vm29, %v26, %v28
  %v31 = vsel %vm25, %v19, %v24
  %v34 = vadd.f32 %v11, %v30
  %v35 = vadd.f32 %v12, %v31
  %v36 = vtanh.pop %v34
  %v37 = vtanh.pop %v35
  %v38 = vadd.f32 %v36, 1.0
  %v39 = vadd.f32 %v37, 1.0
  %v40 = vmul.f32 %v38, 0.5
  %v41 = vmul.f32 %v39, 0.5
  %42 = vst [vmem:[%s2] sm:$0xff] %v40
  %43 = vst [vmem:[%s2 + $0x8] sm:$0xf] %v41
  // Predicated region
  $region10: #{histo_generator_forward.11} parent=0 // pred_check
    _
  $region11: #{histo_generator_forward.11} parent=0 // pred_check_branch
    %45 = sbr.rel (0) target = $region13
  $region12: #{histo_generator_forward.11} parent=0 // pred_region
    _
  $region13: #{histo_generator_forward.11} parent=0 // pred_fallthru
    _
  // Predicated region
  $region14: #{histo_generator_forward.11} parent=0 // pred_check
    _
  $region15: #{histo_generator_forward.11} parent=0 // pred_check_branch
    %47 = sbr.rel (0) target = $region17
  $region16: #{histo_generator_forward.11} parent=0 // pred_region
    _
  $region17: #{histo_generator_forward.11} parent=0 // pred_fallthru
    _

</llo_original>
